<compile_context>
chip_gen: v5e
topology: v5e:2x2
jax: 0.10.0
libtpu: 0.0.40
codegen_flags: <defaults>
</compile_context>

<pallas_src>
import functools

import jax
import jax.numpy as jnp
from jax.experimental import pallas as pl
from jax.experimental.pallas import tpu as pltpu


# ---------------------------------------------------------------------------
# Kernel: one batch tile per grid step; all (fused) weights resident in VMEM.
# ---------------------------------------------------------------------------
def _deepdra_kernel(
    x_ref,                       # (bt, total_in) bf16  [cell | drug | clinical]
    wenc_ref, benc_ref,          # fused encoder (+ clinical identity carry)
    wdec_ref, bdec_ref,          # fused block-diagonal decoder
    m1w_ref, m1b_ref,            # original MLP layer-1 weight / bias
    m2row_ref, m2b_ref,          # MLP layer-2 weight as (1, hidden) row + bias
    out_ref,                     # (bt, OUT_W) bf16 packed output slab
    *, latent_total, dec_cols,
):
    f32 = jnp.float32
    bf16 = jnp.bfloat16

    x = x_ref[...]                                               # (bt, total_in) bf16

    # ---- fused cell/drug encoder + identity carry of clinical features ----
    # feat = [cell_enc_pre | drug_enc_pre | clinical]; ReLU only on latent lanes.
    z = jnp.dot(x, wenc_ref[...], preferred_element_type=f32) + benc_ref[...]
    col = jax.lax.broadcasted_iota(jnp.int32, z.shape, 1)
    feat = jnp.where(col < latent_total, jnp.maximum(z, 0.0), z)  # (bt, L) f32
    feat_bf = feat.astype(bf16)

    # ---- fused cell/drug decoder (block-diagonal; clinical rows are zero) ---
    dec = jax.nn.sigmoid(
        jnp.dot(feat_bf, wdec_ref[...], preferred_element_type=f32)
        + bdec_ref[...])                                         # (bt, cell+drug) f32

    # ---- MLP: Linear(L, hidden) + ReLU; Dropout = identity at inference ----
    h = jnp.maximum(
        jnp.dot(feat_bf, m1w_ref[...], preferred_element_type=f32)
        + m1b_ref[...], 0.0)                                     # (bt, hidden) f32

    # Final Linear(hidden, 1): N=1 matmul wastes the MXU -> VPU multiply + lane reduce.
    logit = jnp.sum(h * m2row_ref[...], axis=-1, keepdims=True) + m2b_ref[...]
    prob = jax.nn.sigmoid(logit)                                 # (bt, 1) f32

    # ---- pack everything into one lane-dense bf16 slab (single unmasked vst) ----
    pad_cols = out_ref.shape[1] - dec_cols
    packed = jnp.concatenate(
        [dec, jnp.broadcast_to(prob, (dec.shape[0], pad_cols))], axis=-1)
    out_ref[...] = packed.astype(out_ref.dtype)


# ---------------------------------------------------------------------------
# Wrapper
# ---------------------------------------------------------------------------
def _round_up(x, m):
    return ((x + m - 1) // m) * m


def _nbytes(*arrs):
    return sum(int(a.size) * a.dtype.itemsize for a in arrs)


def deepdra_forward(cell_x, drug_x, clinical_x, params, *, batch_tile=512):
    B, cell_dim = cell_x.shape
    _, drug_dim = drug_x.shape
    _, clin_dim = clinical_x.shape
    lc = params["ce_w"].shape[1]
    ld = params["de_w"].shape[1]
    hidden = params["m1_w"].shape[1]

    f32 = jnp.float32
    bf16 = jnp.bfloat16

    latent_total = lc + ld
    L = latent_total + clin_dim               # fused "feature" width = MLP input dim
    dec_cols = cell_dim + drug_dim            # fused decoder output width
    total_in = cell_dim + drug_dim + clin_dim
    out_w = _round_up(dec_cols + 1, 128)      # lane-dense packed output width

    # Effective batch tile: multiple of 16 (bf16 sublane packing).  Default covers
    # the whole padded batch in one step (single-TC v5e/v6e: step overhead dominates).
    # NOTE(v7x): for large B prefer an even number of grid steps so both TCs stay busy.
    bt = _round_up(min(int(batch_tile), _round_up(B, 16)), 16)
    Bp = _round_up(B, bt)
    pad = Bp - B
    grid = Bp // bt

    # ---- single lane-dense input slab: [cell | drug | clinical], bf16 ----------
    x_slab = jnp.concatenate([cell_x, drug_x, clinical_x], axis=1).astype(bf16)
    if pad:
        x_slab = jnp.pad(x_slab, ((0, pad), (0, 0)))

    # ---- fused weights (built once; bf16 MXU operands, f32 biases) -------------
    # Encoder + clinical identity carry: (total_in, L)
    w_enc = jnp.zeros((total_in, L), f32)
    w_enc = w_enc.at[0:cell_dim, 0:lc].set(params["ce_w"])
    w_enc = w_enc.at[cell_dim:cell_dim + drug_dim, lc:latent_total].set(params["de_w"])
    w_enc = w_enc.at[cell_dim + drug_dim:, latent_total:].set(jnp.eye(clin_dim, dtype=f32))
    b_enc = jnp.concatenate(
        [params["ce_b"].reshape(1, lc), params["de_b"].reshape(1, ld),
         jnp.zeros((1, clin_dim), f32)], axis=1)

    # Block-diagonal decoder (clinical rows zero): (L, cell_dim+drug_dim)
    w_dec = jnp.zeros((L, dec_cols), f32)
    w_dec = w_dec.at[0:lc, 0:cell_dim].set(params["cd_w"])
    w_dec = w_dec.at[lc:latent_total, cell_dim:].set(params["dd_w"])
    b_dec = jnp.concatenate(
        [params["cd_b"].reshape(1, cell_dim), params["dd_b"].reshape(1, drug_dim)], axis=1)

    w_enc = w_enc.astype(bf16)
    w_dec = w_dec.astype(bf16)
    m1_w = params["m1_w"].astype(bf16)                       # (L, hidden) -- original
    m1_b = params["m1_b"].reshape(1, hidden).astype(f32)
    m2_row = params["m2_w"].reshape(hidden, 1).T.astype(f32)  # (1, hidden) for VPU reduce
    m2_b = params["m2_b"].reshape(1, 1).astype(f32)

    def full_spec(a):
        return pl.BlockSpec(a.shape, lambda i: (0, 0))

    in_specs = [
        pl.BlockSpec((bt, total_in), lambda i: (i, 0)),
        full_spec(w_enc), full_spec(b_enc),
        full_spec(w_dec), full_spec(b_dec),
        full_spec(m1_w), full_spec(m1_b),
        full_spec(m2_row), full_spec(m2_b),
    ]
    out_specs = pl.BlockSpec((bt, out_w), lambda i: (i, 0))
    out_shape = jax.ShapeDtypeStruct((Bp, out_w), bf16)

    # ---- VMEM budget: double-buffered tiles + resident weights + headroom ------
    tile_in_bytes = bt * total_in * 2
    tile_out_bytes = bt * out_w * 2
    weight_bytes = _nbytes(w_enc, b_enc, w_dec, b_dec, m1_w, m1_b, m2_row, m2_b)
    vmem_need = 2 * (tile_in_bytes + tile_out_bytes + weight_bytes) + (4 << 20)
    try:
        dev_vmem = int(pltpu.get_tpu_info().vmem_capacity_bytes)
    except Exception:
        dev_vmem = 64 << 20   # conservative (v7x per-TC VMEM)
    vmem_limit = int(min(max(vmem_need, 16 << 20), dev_vmem - (8 << 20)))

    # ---- advisory cost estimate -------------------------------------------------
    flops = 2 * Bp * (total_in * L + L * dec_cols + L * hidden + hidden)
    transcendentals = Bp * (dec_cols + 1)
    bytes_accessed = (_nbytes(x_slab) + weight_bytes + Bp * out_w * 2)
    cost = pl.CostEstimate(flops=int(flops),
                           transcendentals=int(transcendentals),
                           bytes_accessed=int(bytes_accessed))

    out_slab = pl.pallas_call(
        functools.partial(_deepdra_kernel,
                          latent_total=latent_total, dec_cols=dec_cols),
        out_shape=out_shape,
        grid_spec=pltpu.PrefetchScalarGridSpec(
            num_scalar_prefetch=0,
            grid=(grid,),
            in_specs=in_specs,
            out_specs=out_specs,
        ),
        compiler_params=pltpu.CompilerParams(
            dimension_semantics=("parallel",),
            vmem_limit_bytes=vmem_limit,
        ),
        cost_estimate=cost,
    )(x_slab, w_enc, b_enc, w_dec, b_dec, m1_w, m1_b, m2_row, m2_b)

    # Strip batch padding; unpack the lane-dense slab.
    cell_dec = out_slab[:B, 0:cell_dim].astype(f32)
    drug_dec = out_slab[:B, cell_dim:dec_cols].astype(f32)
    mlp_out = out_slab[:B, dec_cols:dec_cols + 1].astype(f32)
    return cell_dec, drug_dec, mlp_out


# ---------------------------------------------------------------------------
# Pure-JAX reference (mirrors the PyTorch forward, f32) for verification.
# ---------------------------------------------------------------------------
def deepdra_reference(cell_x, drug_x, clinical_x, p):
    cell_enc = jax.nn.relu(cell_x @ p["ce_w"] + p["ce_b"])
    cell_dec = jax.nn.sigmoid(cell_enc @ p["cd_w"] + p["cd_b"])
    drug_enc = jax.nn.relu(drug_x @ p["de_w"] + p["de_b"])
    drug_dec = jax.nn.sigmoid(drug_enc @ p["dd_w"] + p["dd_b"])
    cat = jnp.concatenate([cell_enc, drug_enc, clinical_x], axis=1)
    h = jax.nn.relu(cat @ p["m1_w"] + p["m1_b"])
    mlp_out = jax.nn.sigmoid(h @ p["m2_w"] + p["m2_b"])
    return cell_dec, drug_dec, mlp_out


def init_params(key, cell_dim, drug_dim, clin_dim,
                cell_latent, drug_latent, hidden):
    ks = jax.random.split(key, 8)
    scale = 0.1

    def w(k, shape):
        return (scale * jax.random.normal(k, shape)).astype(jnp.float32)

    mlp_in = cell_latent + drug_latent + clin_dim
    return {
        "ce_w": w(ks[0], (cell_dim, cell_latent)),
        "ce_b": jnp.zeros((1, cell_latent), jnp.float32),
        "cd_w": w(ks[1], (cell_latent, cell_dim)),
        "cd_b": jnp.zeros((1, cell_dim), jnp.float32),
        "de_w": w(ks[2], (drug_dim, drug_latent)),
        "de_b": jnp.zeros((1, drug_latent), jnp.float32),
        "dd_w": w(ks[3], (drug_latent, drug_dim)),
        "dd_b": jnp.zeros((1, drug_dim), jnp.float32),
        "m1_w": w(ks[4], (mlp_in, hidden)),
        "m1_b": jnp.zeros((1, hidden), jnp.float32),
        "m2_w": w(ks[5], (hidden, 1)),
        "m2_b": jnp.zeros((1, 1), jnp.float32),
    }


if __name__ == "__main__":
    # Small, module-consistent shapes.  batch is deliberately NOT a multiple of 16
    # so the padding path is exercised; both the 1-step and multi-step grids are run.
    cell_modality_sizes = [20, 12]     # sum -> 32
    drug_modality_sizes = [16, 16]     # sum -> 32
    clinical_input_dim = 8
    cell_ae_latent_dim = 16
    drug_ae_latent_dim = 16
    mlp_hidden = 128                   # canonical DeepDRA MLP hidden width
    batch = 300

    cell_dim = sum(cell_modality_sizes)
    drug_dim = sum(drug_modality_sizes)

    key = jax.random.PRNGKey(0)
    k_cell, k_drug, k_clin, k_params = jax.random.split(key, 4)

    cell_x = jax.random.normal(k_cell, (batch, cell_dim), jnp.float32)
    drug_x = jax.random.normal(k_drug, (batch, drug_dim), jnp.float32)
    clinical_x = jax.random.normal(k_clin, (batch, clinical_input_dim), jnp.float32)

    params = init_params(k_params, cell_dim, drug_dim, clinical_input_dim,
                         cell_ae_latent_dim, drug_ae_latent_dim, mlp_hidden)

    ref_cell, ref_drug, ref_mlp = deepdra_reference(cell_x, drug_x, clinical_x, params)

    # 1) Default: whole padded batch in one grid step (minimal per-step overhead).
    cell_dec, drug_dec, mlp_out = deepdra_forward(cell_x, drug_x, clinical_x, params)
    jax.block_until_ready((cell_dec, drug_dec, mlp_out))
    assert cell_dec.shape == (batch, cell_dim)
    assert drug_dec.shape == (batch, drug_dim)
    assert mlp_out.shape == (batch, 1)
    assert jnp.allclose(cell_dec, ref_cell, atol=2e-2)
    assert jnp.allclose(drug_dec, ref_drug, atol=2e-2)
    assert jnp.allclose(mlp_out, ref_mlp, atol=2e-2)

    # 2) Tiled path: multiple grid steps + batch padding exercised.
    cell_dec2, drug_dec2, mlp_out2 = deepdra_forward(
        cell_x, drug_x, clinical_x, params, batch_tile=128)
    jax.block_until_ready((cell_dec2, drug_dec2, mlp_out2))
    assert jnp.allclose(cell_dec2, ref_cell, atol=2e-2)
    assert jnp.allclose(drug_dec2, ref_drug, atol=2e-2)
    assert jnp.allclose(mlp_out2, ref_mlp, atol=2e-2)

    print("KERNEL_OK")
</pallas_src>

<mosaic_0001>
module attributes {stable_mosaic.version = 11 : i64} {
  func.func @_deepdra_kernel(%arg0: i32, %arg1: memref<304x72xbf16, #tpu.memory_space<vmem>>, %arg2: memref<72x40xbf16, #tpu.memory_space<vmem>>, %arg3: memref<1x40xf32, #tpu.memory_space<vmem>>, %arg4: memref<40x64xbf16, #tpu.memory_space<vmem>>, %arg5: memref<1x64xf32, #tpu.memory_space<vmem>>, %arg6: memref<40x128xbf16, #tpu.memory_space<vmem>>, %arg7: memref<1x128xf32, #tpu.memory_space<vmem>>, %arg8: memref<1x128xf32, #tpu.memory_space<vmem>>, %arg9: memref<1x1xf32, #tpu.memory_space<vmem>>, %arg10: memref<304x128xbf16, #tpu.memory_space<vmem>>) attributes {dimension_semantics = [#tpu.dimension_semantics<parallel>], iteration_bounds = array<i64: 1>, scalar_prefetch = 0 : i64, scratch_operands = 0 : i64, tpu.core_type = #tpu.core_type<tc>, window_params = [{transform_indices = @transform_0, window_bounds = array<i64: 304, 72>}, {pipeline_mode = #tpu.pipeline_mode<synchronous>, transform_indices = @transform_1, window_bounds = array<i64: 72, 40>}, {pipeline_mode = #tpu.pipeline_mode<synchronous>, transform_indices = @transform_2, window_bounds = array<i64: 1, 40>}, {pipeline_mode = #tpu.pipeline_mode<synchronous>, transform_indices = @transform_3, window_bounds = array<i64: 40, 64>}, {pipeline_mode = #tpu.pipeline_mode<synchronous>, transform_indices = @transform_4, window_bounds = array<i64: 1, 64>}, {pipeline_mode = #tpu.pipeline_mode<synchronous>, transform_indices = @transform_5, window_bounds = array<i64: 40, 128>}, {pipeline_mode = #tpu.pipeline_mode<synchronous>, transform_indices = @transform_6, window_bounds = array<i64: 1, 128>}, {pipeline_mode = #tpu.pipeline_mode<synchronous>, transform_indices = @transform_7, window_bounds = array<i64: 1, 128>}, {pipeline_mode = #tpu.pipeline_mode<synchronous>, transform_indices = @transform_8, window_bounds = array<i64: 1, 1>}, {transform_indices = @transform_9, window_bounds = array<i64: 304, 128>}]} {
    %c0 = arith.constant 0 : index
    %c0_0 = arith.constant 0 : index
    %0 = vector.load %arg1[%c0, %c0_0] : memref<304x72xbf16, #tpu.memory_space<vmem>>, vector<304x72xbf16>
    %c0_1 = arith.constant 0 : index
    %c0_2 = arith.constant 0 : index
    %1 = vector.load %arg2[%c0_1, %c0_2] : memref<72x40xbf16, #tpu.memory_space<vmem>>, vector<72x40xbf16>
    %cst = arith.constant dense<0.000000e+00> : vector<304x40xf32>
    %2 = tpu.matmul %0, %1, %cst {dimension_numbers = #tpu.dot_dimension_numbers<[1], [0], [0], [1], [0, 0, 1, 1], [], []>} : vector<304x72xbf16>, vector<72x40xbf16>, vector<304x40xf32> -> vector<304x40xf32>
    %c0_3 = arith.constant 0 : index
    %c0_4 = arith.constant 0 : index
    %3 = vector.load %arg3[%c0_3, %c0_4] : memref<1x40xf32, #tpu.memory_space<vmem>>, vector<1x40xf32>
    %4 = vector.broadcast %3 : vector<1x40xf32> to vector<304x40xf32>
    %5 = arith.addf %2, %4 : vector<304x40xf32>
    %6 = tpu.iota {dimensions = array<i32: 1>} : vector<304x40xi32>
    %c32_i32 = arith.constant 32 : i32
    %7 = vector.broadcast %c32_i32 : i32 to vector<304x40xi32>
    %8 = arith.cmpi slt, %6, %7 : vector<304x40xi32>
    %cst_5 = arith.constant 0.000000e+00 : f32
    %9 = vector.broadcast %cst_5 : f32 to vector<304x40xf32>
    %10 = arith.maximumf %5, %9 : vector<304x40xf32>
    %11 = arith.select %8, %10, %5 : vector<304x40xi1>, vector<304x40xf32>
    %12 = arith.truncf %11 : vector<304x40xf32> to vector<304x40xbf16>
    %c0_6 = arith.constant 0 : index
    %c0_7 = arith.constant 0 : index
    %13 = vector.load %arg4[%c0_6, %c0_7] : memref<40x64xbf16, #tpu.memory_space<vmem>>, vector<40x64xbf16>
    %cst_8 = arith.constant dense<0.000000e+00> : vector<304x64xf32>
    %14 = tpu.matmul %12, %13, %cst_8 {dimension_numbers = #tpu.dot_dimension_numbers<[1], [0], [0], [1], [0, 0, 1, 1], [], []>} : vector<304x40xbf16>, vector<40x64xbf16>, vector<304x64xf32> -> vector<304x64xf32>
    %c0_9 = arith.constant 0 : index
    %c0_10 = arith.constant 0 : index
    %15 = vector.load %arg5[%c0_9, %c0_10] : memref<1x64xf32, #tpu.memory_space<vmem>>, vector<1x64xf32>
    %16 = vector.broadcast %15 : vector<1x64xf32> to vector<304x64xf32>
    %17 = arith.addf %14, %16 : vector<304x64xf32>
    %18 = arith.negf %17 : vector<304x64xf32>
    %19 = math.exp %18 : vector<304x64xf32>
    %cst_11 = arith.constant 1.000000e+00 : f32
    %20 = vector.broadcast %cst_11 : f32 to vector<304x64xf32>
    %21 = arith.addf %20, %19 : vector<304x64xf32>
    %22 = arith.divf %20, %21 : vector<304x64xf32>
    %c0_12 = arith.constant 0 : index
    %c0_13 = arith.constant 0 : index
    %23 = vector.load %arg6[%c0_12, %c0_13] : memref<40x128xbf16, #tpu.memory_space<vmem>>, vector<40x128xbf16>
    %cst_14 = arith.constant dense<0.000000e+00> : vector<304x128xf32>
    %24 = tpu.matmul %12, %23, %cst_14 {dimension_numbers = #tpu.dot_dimension_numbers<[1], [0], [0], [1], [0, 0, 1, 1], [], []>} : vector<304x40xbf16>, vector<40x128xbf16>, vector<304x128xf32> -> vector<304x128xf32>
    %c0_15 = arith.constant 0 : index
    %c0_16 = arith.constant 0 : index
    %25 = vector.load %arg7[%c0_15, %c0_16] : memref<1x128xf32, #tpu.memory_space<vmem>>, vector<1x128xf32>
    %26 = vector.broadcast %25 : vector<1x128xf32> to vector<304x128xf32>
    %27 = arith.addf %24, %26 : vector<304x128xf32>
    %cst_17 = arith.constant 0.000000e+00 : f32
    %28 = vector.broadcast %cst_17 : f32 to vector<304x128xf32>
    %29 = arith.maximumf %27, %28 : vector<304x128xf32>
    %c0_18 = arith.constant 0 : index
    %c0_19 = arith.constant 0 : index
    %30 = vector.load %arg8[%c0_18, %c0_19] : memref<1x128xf32, #tpu.memory_space<vmem>>, vector<1x128xf32>
    %31 = vector.broadcast %30 : vector<1x128xf32> to vector<304x128xf32>
    %32 = arith.mulf %29, %31 : vector<304x128xf32>
    %cst_20 = arith.constant dense<0.000000e+00> : vector<304xf32>
    %33 = vector.multi_reduction <add>, %32, %cst_20 [1] : vector<304x128xf32> to vector<304xf32>
    %34 = vector.shape_cast %33 : vector<304xf32> to vector<304x1xf32>
    %c0_21 = arith.constant 0 : index
    %c0_22 = arith.constant 0 : index
    %35 = vector.load %arg9[%c0_21, %c0_22] : memref<1x1xf32, #tpu.memory_space<vmem>>, vector<1x1xf32>
    %36 = vector.broadcast %35 : vector<1x1xf32> to vector<304x1xf32>
    %37 = arith.addf %34, %36 : vector<304x1xf32>
    %38 = arith.negf %37 : vector<304x1xf32>
    %39 = math.exp %38 : vector<304x1xf32>
    %cst_23 = arith.constant 1.000000e+00 : f32
    %40 = vector.broadcast %cst_23 : f32 to vector<304x1xf32>
    %41 = arith.addf %40, %39 : vector<304x1xf32>
    %42 = arith.divf %40, %41 : vector<304x1xf32>
    %43 = vector.shape_cast %42 : vector<304x1xf32> to vector<304x1xf32>
    %44 = vector.broadcast %43 : vector<304x1xf32> to vector<304x64xf32>
    %45 = tpu.concatenate %22, %44 in 1 : vector<304x64xf32>, vector<304x64xf32> -> vector<304x128xf32>
    %46 = arith.truncf %45 : vector<304x128xf32> to vector<304x128xbf16>
    %c0_24 = arith.constant 0 : index
    %c0_25 = arith.constant 0 : index
    %47 = vector.load %arg10[%c0_24, %c0_25] : memref<304x128xbf16, #tpu.memory_space<vmem>>, vector<304x128xbf16>
    tpu.vector_store %arg10[%c0_24, %c0_25], %46 {strides = array<i32>} : memref<304x128xbf16, #tpu.memory_space<vmem>>, vector<304x128xbf16>,
    return
  }
  func.func @transform_0(%arg0: i32) -> (i32, i32) {
    %c0_i32 = arith.constant 0 : i32
    %c0_i32_0 = arith.constant 0 : i32
    return %arg0, %c0_i32 : i32, i32
  }
  func.func @transform_1(%arg0: i32) -> (i32, i32) {
    %c0_i32 = arith.constant 0 : i32
    %c0_i32_0 = arith.constant 0 : i32
    %c0_i32_1 = arith.constant 0 : i32
    return %c0_i32, %c0_i32_0 : i32, i32
  }
  func.func @transform_2(%arg0: i32) -> (i32, i32) {
    %c0_i32 = arith.constant 0 : i32
    %c0_i32_0 = arith.constant 0 : i32
    %c0_i32_1 = arith.constant 0 : i32
    return %c0_i32, %c0_i32_0 : i32, i32
  }
  func.func @transform_3(%arg0: i32) -> (i32, i32) {
    %c0_i32 = arith.constant 0 : i32
    %c0_i32_0 = arith.constant 0 : i32
    %c0_i32_1 = arith.constant 0 : i32
    return %c0_i32, %c0_i32_0 : i32, i32
  }
  func.func @transform_4(%arg0: i32) -> (i32, i32) {
    %c0_i32 = arith.constant 0 : i32
    %c0_i32_0 = arith.constant 0 : i32
    %c0_i32_1 = arith.constant 0 : i32
    return %c0_i32, %c0_i32_0 : i32, i32
  }
  func.func @transform_5(%arg0: i32) -> (i32, i32) {
    %c0_i32 = arith.constant 0 : i32
    %c0_i32_0 = arith.constant 0 : i32
    %c0_i32_1 = arith.constant 0 : i32
    return %c0_i32, %c0_i32_0 : i32, i32
  }
  func.func @transform_6(%arg0: i32) -> (i32, i32) {
    %c0_i32 = arith.constant 0 : i32
    %c0_i32_0 = arith.constant 0 : i32
    %c0_i32_1 = arith.constant 0 : i32
    return %c0_i32, %c0_i32_0 : i32, i32
  }
  func.func @transform_7(%arg0: i32) -> (i32, i32) {
    %c0_i32 = arith.constant 0 : i32
    %c0_i32_0 = arith.constant 0 : i32
    %c0_i32_1 = arith.constant 0 : i32
    return %c0_i32, %c0_i32_0 : i32, i32
  }
  func.func @transform_8(%arg0: i32) -> (i32, i32) {
    %c0_i32 = arith.constant 0 : i32
    %c0_i32_0 = arith.constant 0 : i32
    %c0_i32_1 = arith.constant 0 : i32
    return %c0_i32, %c0_i32_0 : i32, i32
  }
  func.func @transform_9(%arg0: i32) -> (i32, i32) {
    %c0_i32 = arith.constant 0 : i32
    %c0_i32_0 = arith.constant 0 : i32
    return %arg0, %c0_i32 : i32, i32
  }
}

</mosaic_0001>

<llo_original>
// kernel: tpu_custom_call.1
$region0: #{tpu_custom_call.1}
  #allocation0 [shape = 'u32[]', space=smem, size = 0x4, offset = 0x4, fixed_abs, tag = 'smem constant byte address 0x4 - core index']
  #allocation1 [shape = 'u32[72,128]{1,0:T(1,128)}', space=vmem, size = 0x9000, scoped, tag = 'internal scratch']
  #allocation2 [shape = 'f32[1,1]{1,0:T(1,128)S(1)}', space=vmem, size = 0x200, scoped, tag = 'scoped memory for tpu_custom_call.1']
  %s0 = inlined_call_operand.vmem [shape: bf16[304,72], index: 0, kind: input, shape index: {}]
  %s1 = inlined_call_operand.vmem [shape: bf16[72,40], index: 1, kind: input, shape index: {}]
  %s2 = inlined_call_operand.vmem [shape: f32[1,40], index: 2, kind: input, shape index: {}]
  %s3 = inlined_call_operand.vmem [shape: bf16[40,64], index: 3, kind: input, shape index: {}]
  %s4 = inlined_call_operand.vmem [shape: f32[1,64], index: 4, kind: input, shape index: {}]
  %s5 = inlined_call_operand.vmem [shape: bf16[40,128], index: 5, kind: input, shape index: {}]
  %s6 = inlined_call_operand.vmem [shape: f32[1,128], index: 6, kind: input, shape index: {}]
  %s7 = inlined_call_operand.vmem [shape: f32[1,128], index: 7, kind: input, shape index: {}]
  %s8 = inlined_call_operand.<no memory space> [shape: f32[1,1], index: 8, kind: input, shape index: {}]
  %s9 = inlined_call_operand.hbm [shape: bf16[304,128], index: 9, kind: output, shape index: {}]
  %s10 = sld [smem:[#allocation0]]
  $region46: #{tpu_custom_call.1} parent=0
    _
  %s12 = ssub.s32 1, %s10
  %s13 = scalar_select 0, %s12, %s10
  %v14 = vstv %s8
  %15 = vst [vmem:[#allocation2] sm:$0x1] %v14
  $region1: #{tpu_custom_call.1} parent=0
    #allocation3 [shape = 'u8[77824]{0}', space=vmem, size = 0x13000, scoped, tag = 'output window, operand 0, single buffered']
    #allocation4 [shape = 's32[1]{0}', space=sflag, size = 0x4, scoped, tag = 'scoped memory for tpu_custom_call.1']
    %16 = vsyncpa [#allocation4], 0
    // Predicated region
    $region2: #{tpu_custom_call.1} parent=1 // pred_check
      _
    $region3: #{tpu_custom_call.1} parent=1 // pred_check_branch
      %18 = sbr.rel (0) target = $region5
    $region4: #{tpu_custom_call.1} parent=1 // pred_region
      _
    $region5: #{tpu_custom_call.1} parent=1 // pred_fallthru
      _
    // Predicated region
    $region6: #{tpu_custom_call.1} parent=1 // pred_check
      _
    $region7: #{tpu_custom_call.1} parent=1 // pred_check_branch
      %20 = sbr.rel (0) target = $region9
    $region8: #{tpu_custom_call.1} parent=1 // pred_region
      _
    $region9: #{tpu_custom_call.1} parent=1 // pred_fallthru
      _
    // Predicated region
    $region10: #{tpu_custom_call.1} parent=1 // pred_check
      _
    $region11: #{tpu_custom_call.1} parent=1 // pred_check_branch
      %22 = sbr.rel (0) target = $region13
    $region12: #{tpu_custom_call.1} parent=1 // pred_region
      _
    $region13: #{tpu_custom_call.1} parent=1 // pred_fallthru
      _
    // Predicated region
    $region14: #{tpu_custom_call.1} parent=1 // pred_check
      _
    $region15: #{tpu_custom_call.1} parent=1 // pred_check_branch
      %24 = sbr.rel (0) target = $region17
    $region16: #{tpu_custom_call.1} parent=1 // pred_region
      _
    $region17: #{tpu_custom_call.1} parent=1 // pred_fallthru
      _
    // Predicated region
    $region18: #{tpu_custom_call.1} parent=1 // pred_check
      _
    $region19: #{tpu_custom_call.1} parent=1 // pred_check_branch
      %26 = sbr.rel (0) target = $region21
    $region20: #{tpu_custom_call.1} parent=1 // pred_region
      _
    $region21: #{tpu_custom_call.1} parent=1 // pred_fallthru
      _
    // Predicated region
    $region22: #{tpu_custom_call.1} parent=1 // pred_check
      _
    $region23: #{tpu_custom_call.1} parent=1 // pred_check_branch
      %28 = sbr.rel (0) target = $region25
    $region24: #{tpu_custom_call.1} parent=1 // pred_region
      _
    $region25: #{tpu_custom_call.1} parent=1 // pred_fallthru
      _
    // Predicated region
    $region26: #{tpu_custom_call.1} parent=1 // pred_check
      _
    $region27: #{tpu_custom_call.1} parent=1 // pred_check_branch
      %30 = sbr.rel (0) target = $region29
    $region28: #{tpu_custom_call.1} parent=1 // pred_region
      _
    $region29: #{tpu_custom_call.1} parent=1 // pred_fallthru
      _
    // Predicated region
    $region30: #{tpu_custom_call.1} parent=1 // pred_check
      _
    $region31: #{tpu_custom_call.1} parent=1 // pred_check_branch
      %32 = sbr.rel (0) target = $region33
    $region32: #{tpu_custom_call.1} parent=1 // pred_region
      _
    $region33: #{tpu_custom_call.1} parent=1 // pred_fallthru
      _
    // Predicated region
    $region34: #{tpu_custom_call.1} parent=1 // pred_check
      _
    $region35: #{tpu_custom_call.1} parent=1 // pred_check_branch
      %34 = sbr.rel (0) target = $region37
    $region36: #{tpu_custom_call.1} parent=1 // pred_region
      _
    $region37: #{tpu_custom_call.1} parent=1 // pred_fallthru
      _
    %v36 = vld [vmem:[%s0] sm:$0xf]
    %v37 = vld [vmem:[%s0 + $0x4] sm:$0xf]
    %v38 = vld [vmem:[%s0 + $0x8] sm:$0xf]
    %v39 = vld [vmem:[%s0 + $0xc] sm:$0xf]
    %v40 = vld [vmem:[%s0 + $0x10] sm:$0xf]
    %v41 = vld [vmem:[%s0 + $0x14] sm:$0xf]
    %v42 = vld [vmem:[%s0 + $0x18] sm:$0xf]
    %v43 = vld [vmem:[%s0 + $0x1c] sm:$0xf]
    %v44 = vld [vmem:[%s0 + $0x20] sm:$0xf]
    %v45 = vld [vmem:[%s0 + $0x24] sm:$0xf]
    %v46 = vld [vmem:[%s0 + $0x28] sm:$0xf]
    %v47 = vld [vmem:[%s0 + $0x2c] sm:$0xf]
    %v48 = vld [vmem:[%s0 + $0x30] sm:$0xf]
    %v49 = vld [vmem:[%s0 + $0x34] sm:$0xf]
    %v50 = vld [vmem:[%s0 + $0x38] sm:$0xf]
    %v51 = vld [vmem:[%s0 + $0x3c] sm:$0xf]
    %v52 = vld [vmem:[%s0 + $0x40] sm:$0xf]
    %v53 = vld [vmem:[%s0 + $0x44] sm:$0xf]
    %v54 = vld [vmem:[%s0 + $0x48] sm:$0xf]
    %v55 = vld [vmem:[%s0 + $0x4c] sm:$0xf]
    %v56 = vld [vmem:[%s0 + $0x50] sm:$0xf]
    %v57 = vld [vmem:[%s0 + $0x54] sm:$0xf]
    %v58 = vld [vmem:[%s0 + $0x58] sm:$0xf]
    %v59 = vld [vmem:[%s0 + $0x5c] sm:$0xf]
    %v60 = vld [vmem:[%s0 + $0x60] sm:$0xf]
    %v61 = vld [vmem:[%s0 + $0x64] sm:$0xf]
    %v62 = vld [vmem:[%s0 + $0x68] sm:$0xf]
    %v63 = vld [vmem:[%s0 + $0x6c] sm:$0xf]
    %v64 = vld [vmem:[%s0 + $0x70] sm:$0xf]
    %v65 = vld [vmem:[%s0 + $0x74] sm:$0xf]
    %v66 = vld [vmem:[%s0 + $0x78] sm:$0xf]
    %v67 = vld [vmem:[%s0 + $0x7c] sm:$0xf]
    %v68 = vld [vmem:[%s0 + $0x80] sm:$0xf]
    %v69 = vld [vmem:[%s0 + $0x84] sm:$0xf]
    %v70 = vld [vmem:[%s0 + $0x88] sm:$0xf]
    %v71 = vld [vmem:[%s0 + $0x8c] sm:$0xf]
    %v72 = vld [vmem:[%s0 + $0x90] sm:$0xf]
    %v73 = vld [vmem:[%s0 + $0x94] sm:$0xf]
    %v74 = vld [vmem:[%s1] sm:$0xf]
    %v75 = vld [vmem:[%s1 + $0x4] sm:$0xf]
    %v76 = vld [vmem:[%s1 + $0x8] sm:$0xf]
    %v77 = vld [vmem:[%s1 + $0xc] sm:$0xf]
    %v78 = vld [vmem:[%s1 + $0x10] sm:$0xf]
    %v79 = vld [vmem:[%s1 + $0x14] sm:$0xf]
    %v80 = vld [vmem:[%s1 + $0x18] sm:$0xf]
    %v81 = vld [vmem:[%s1 + $0x1c] sm:$0xf]
    %v82 = vld [vmem:[%s1 + $0x20] sm:$0xf]
    %v83 = vld [vmem:[%s2] sm:$0x1]
    %v85 = vperm.slane %v83, 0
    %v125 = vunpack.c.l.b16 %v36
    %v126 = vunpack.c.l.b16 %v37
    %v127 = vunpack.c.l.b16 %v38
    %v128 = vunpack.c.l.b16 %v39
    %v129 = vunpack.c.l.b16 %v40
    %v130 = vunpack.c.l.b16 %v41
    %v131 = vunpack.c.l.b16 %v42
    %v132 = vunpack.c.l.b16 %v43
    %v133 = vunpack.c.l.b16 %v44
    %v134 = vunpack.c.l.b16 %v45
    %v135 = vunpack.c.l.b16 %v46
    %v136 = vunpack.c.l.b16 %v47
    %v137 = vunpack.c.l.b16 %v48
    %v138 = vunpack.c.l.b16 %v49
    %v139 = vunpack.c.l.b16 %v50
    %v140 = vunpack.c.l.b16 %v51
    %v141 = vunpack.c.l.b16 %v52
    %v142 = vunpack.c.l.b16 %v53
    %v143 = vunpack.c.l.b16 %v54
    %v144 = vunpack.c.l.b16 %v55
    %v145 = vunpack.c.l.b16 %v56
    %v146 = vunpack.c.l.b16 %v57
    %v147 = vunpack.c.l.b16 %v58
    %v148 = vunpack.c.l.b16 %v59
    %v149 = vunpack.c.l.b16 %v60
    %v150 = vunpack.c.l.b16 %v61
    %v151 = vunpack.c.l.b16 %v62
    %v152 = vunpack.c.l.b16 %v63
    %v153 = vunpack.c.l.b16 %v64
    %v154 = vunpack.c.l.b16 %v65
    %v155 = vunpack.c.l.b16 %v66
    %v156 = vunpack.c.l.b16 %v67
    %v157 = vunpack.c.l.b16 %v68
    %v158 = vunpack.c.l.b16 %v69
    %v159 = vunpack.c.l.b16 %v70
    %v160 = vunpack.c.l.b16 %v71
    %v161 = vunpack.c.l.b16 %v72
    %v162 = vunpack.c.l.b16 %v73
    %v163 = vpack.c.b16 %v126, %v125
    %v164 = vpack.c.b16 %v128, %v127
    %v165 = vpack.c.b16 %v130, %v129
    %v166 = vpack.c.b16 %v132, %v131
    %v167 = vpack.c.b16 %v134, %v133
    %v168 = vpack.c.b16 %v136, %v135
    %v169 = vpack.c.b16 %v138, %v137
    %v170 = vpack.c.b16 %v140, %v139
    %v171 = vpack.c.b16 %v142, %v141
    %v172 = vpack.c.b16 %v144, %v143
    %v173 = vpack.c.b16 %v146, %v145
    %v174 = vpack.c.b16 %v148, %v147
    %v175 = vpack.c.b16 %v150, %v149
    %v176 = vpack.c.b16 %v152, %v151
    %v177 = vpack.c.b16 %v154, %v153
    %v178 = vpack.c.b16 %v156, %v155
    %v179 = vpack.c.b16 %v158, %v157
    %v180 = vpack.c.b16 %v160, %v159
    %v181 = vpack.c.b16 %v162, %v161
    %v191 = vunpack.c.l.b16 %v74
    %v192 = vunpack.c.l.b16 %v75
    %v193 = vunpack.c.l.b16 %v76
    %v194 = vunpack.c.l.b16 %v77
    %v195 = vunpack.c.l.b16 %v78
    %v196 = vunpack.c.l.b16 %v79
    %v197 = vunpack.c.l.b16 %v80
    %v198 = vunpack.c.l.b16 %v81
    %v199 = vunpack.c.l.b16 %v82
    %v200 = vpack.c.b16 %v192, %v191
    %v201 = vpack.c.b16 %v194, %v193
    %v202 = vpack.c.b16 %v196, %v195
    %v203 = vpack.c.b16 %v198, %v197
    %v204 = vpack.c.b16 %v199, %v199
    %vm209 = vcmask 588800
    %v211 = vsel %vm209, %v163, 0
    %v214 = vsel %vm209, %v164, 0
    %v217 = vsel %vm209, %v165, 0
    %v220 = vsel %vm209, %v166, 0
    %v223 = vsel %vm209, %v167, 0
    %v226 = vsel %vm209, %v168, 0
    %v229 = vsel %vm209, %v169, 0
    %v232 = vsel %vm209, %v170, 0
    %v235 = vsel %vm209, %v171, 0
    %v238 = vsel %vm209, %v172, 0
    %v241 = vsel %vm209, %v173, 0
    %v244 = vsel %vm209, %v174, 0
    %v247 = vsel %vm209, %v175, 0
    %v250 = vsel %vm209, %v176, 0
    %v253 = vsel %vm209, %v177, 0
    %v256 = vsel %vm209, %v178, 0
    %v259 = vsel %vm209, %v179, 0
    %v262 = vsel %vm209, %v180, 0
    %v265 = vsel %vm209, %v181, 0
    %vm267 = vcmask 1043456
    %v269 = vsel %vm267, %v204, 0
    %271 = vmatpush.bf16.msra.mxu0 0
    %272 = vmatpush.bf16.msra.mxu0 0
    %273 = vmatpush.bf16.msra.mxu0 0
    %274 = vmatpush.bf16.msra.mxu0 %v269
    %275 = vmatpush.bf16.msra.mxu0 %v203
    %276 = vmatpush.bf16.msra.mxu0 %v202
    %277 = vmatpush.bf16.msra.mxu0 %v201
    %278 = vmatpush.bf16.msra.mxu0 %v200
    %279 = vmatmul.bf16.gmra.mxu0 %v211
    %v280 = vpop.f32.mrf.mxu0
    %v281 = vadd.f32 %v85, %v280
    %v282 = vpop.f32.mrf.mxu0
    %v283 = vadd.f32 %v85, %v282
    %284 = vmatmul.bf16.gmra.mxu0 %v214
    %v285 = vpop.f32.mrf.mxu0
    %v286 = vadd.f32 %v85, %v285
    %v287 = vpop.f32.mrf.mxu0
    %v288 = vadd.f32 %v85, %v287
    %289 = vmatmul.bf16.gmra.mxu0 %v217
    %v290 = vpop.f32.mrf.mxu0
    %v291 = vadd.f32 %v85, %v290
    %v292 = vpop.f32.mrf.mxu0
    %v293 = vadd.f32 %v85, %v292
    %294 = vmatmul.bf16.gmra.mxu0 %v220
    %v295 = vpop.f32.mrf.mxu0
    %v296 = vadd.f32 %v85, %v295
    %v297 = vpop.f32.mrf.mxu0
    %v298 = vadd.f32 %v85, %v297
    %299 = vmatmul.bf16.gmra.mxu0 %v223
    %v300 = vpop.f32.mrf.mxu0
    %v301 = vadd.f32 %v85, %v300
    %v302 = vpop.f32.mrf.mxu0
    %v303 = vadd.f32 %v85, %v302
    %304 = vmatmul.bf16.gmra.mxu0 %v226
    %v305 = vpop.f32.mrf.mxu0
    %v306 = vadd.f32 %v85, %v305
    %v307 = vpop.f32.mrf.mxu0
    %v308 = vadd.f32 %v85, %v307
    %309 = vmatmul.bf16.gmra.mxu0 %v229
    %v310 = vpop.f32.mrf.mxu0
    %v311 = vadd.f32 %v85, %v310
    %v312 = vpop.f32.mrf.mxu0
    %v313 = vadd.f32 %v85, %v312
    %314 = vmatmul.bf16.gmra.mxu0 %v232
    %v315 = vpop.f32.mrf.mxu0
    %v316 = vadd.f32 %v85, %v315
    %v317 = vpop.f32.mrf.mxu0
    %v318 = vadd.f32 %v85, %v317
    %319 = vmatmul.bf16.gmra.mxu0 %v235
    %v320 = vpop.f32.mrf.mxu0
    %v321 = vadd.f32 %v85, %v320
    %v322 = vpop.f32.mrf.mxu0
    %v323 = vadd.f32 %v85, %v322
    %324 = vmatmul.bf16.gmra.mxu0 %v238
    %v325 = vpop.f32.mrf.mxu0
    %v326 = vadd.f32 %v85, %v325
    %v327 = vpop.f32.mrf.mxu0
    %v328 = vadd.f32 %v85, %v327
    %329 = vmatmul.bf16.gmra.mxu0 %v241
    %v330 = vpop.f32.mrf.mxu0
    %v331 = vadd.f32 %v85, %v330
    %v332 = vpop.f32.mrf.mxu0
    %v333 = vadd.f32 %v85, %v332
    %334 = vmatmul.bf16.gmra.mxu0 %v244
    %v335 = vpop.f32.mrf.mxu0
    %v336 = vadd.f32 %v85, %v335
    %v337 = vpop.f32.mrf.mxu0
    %v338 = vadd.f32 %v85, %v337
    %339 = vmatmul.bf16.gmra.mxu0 %v247
    %v340 = vpop.f32.mrf.mxu0
    %v341 = vadd.f32 %v85, %v340
    %v342 = vpop.f32.mrf.mxu0
    %v343 = vadd.f32 %v85, %v342
    %344 = vmatmul.bf16.gmra.mxu0 %v250
    %v345 = vpop.f32.mrf.mxu0
    %v346 = vadd.f32 %v85, %v345
    %v347 = vpop.f32.mrf.mxu0
    %v348 = vadd.f32 %v85, %v347
    %349 = vmatmul.bf16.gmra.mxu0 %v253
    %v350 = vpop.f32.mrf.mxu0
    %v351 = vadd.f32 %v85, %v350
    %v352 = vpop.f32.mrf.mxu0
    %v353 = vadd.f32 %v85, %v352
    %354 = vmatmul.bf16.gmra.mxu0 %v256
    %v355 = vpop.f32.mrf.mxu0
    %v356 = vadd.f32 %v85, %v355
    %v357 = vpop.f32.mrf.mxu0
    %v358 = vadd.f32 %v85, %v357
    %359 = vmatmul.bf16.gmra.mxu0 %v259
    %v360 = vpop.f32.mrf.mxu0
    %v361 = vadd.f32 %v85, %v360
    %v362 = vpop.f32.mrf.mxu0
    %v363 = vadd.f32 %v85, %v362
    %364 = vmatmul.bf16.gmra.mxu0 %v262
    %v365 = vpop.f32.mrf.mxu0
    %v366 = vadd.f32 %v85, %v365
    %v367 = vpop.f32.mrf.mxu0
    %v368 = vadd.f32 %v85, %v367
    %369 = vmatmul.bf16.gmra.mxu0 %v265
    %v370 = vpop.f32.mrf.mxu0
    %v371 = vadd.f32 %v85, %v370
    %v372 = vpop.f32.mrf.mxu0
    %v373 = vadd.f32 %v85, %v372
    %374 = vdwg.mxu0
    %v375 = vlaneseq
    %v376 = vand.u32 %v375, 127
    %vm377 = vcmp.lt.s32.totalorder %v376, 32
    %v378 = vmax.f32 %v281, 0.0
    %v379 = vmax.f32 %v283, 0.0
    %v380 = vmax.f32 %v286, 0.0
    %v381 = vmax.f32 %v288, 0.0
    %v382 = vmax.f32 %v291, 0.0
    %v383 = vmax.f32 %v293, 0.0
    %v384 = vmax.f32 %v296, 0.0
    %v385 = vmax.f32 %v298, 0.0
    %v386 = vmax.f32 %v301, 0.0
    %v387 = vmax.f32 %v303, 0.0
    %v388 = vmax.f32 %v306, 0.0
    %v389 = vmax.f32 %v308, 0.0
    %v390 = vmax.f32 %v311, 0.0
    %v391 = vmax.f32 %v313, 0.0
    %v392 = vmax.f32 %v316, 0.0
    %v393 = vmax.f32 %v318, 0.0
    %v394 = vmax.f32 %v321, 0.0
    %v395 = vmax.f32 %v323, 0.0
    %v396 = vmax.f32 %v326, 0.0
    %v397 = vmax.f32 %v328, 0.0
    %v398 = vmax.f32 %v331, 0.0
    %v399 = vmax.f32 %v333, 0.0
    %v400 = vmax.f32 %v336, 0.0
    %v401 = vmax.f32 %v338, 0.0
    %v402 = vmax.f32 %v341, 0.0
    %v403 = vmax.f32 %v343, 0.0
    %v404 = vmax.f32 %v346, 0.0
    %v405 = vmax.f32 %v348, 0.0
    %v406 = vmax.f32 %v351, 0.0
    %v407 = vmax.f32 %v353, 0.0
    %v408 = vmax.f32 %v356, 0.0
    %v409 = vmax.f32 %v358, 0.0
    %v410 = vmax.f32 %v361, 0.0
    %v411 = vmax.f32 %v363, 0.0
    %v412 = vmax.f32 %v366, 0.0
    %v413 = vmax.f32 %v368, 0.0
    %v414 = vmax.f32 %v371, 0.0
    %v415 = vmax.f32 %v373, 0.0
    %v416 = vsel %vm377, %v378, %v281
    %v417 = vsel %vm377, %v379, %v283
    %v418 = vsel %vm377, %v380, %v286
    %v419 = vsel %vm377, %v381, %v288
    %v420 = vsel %vm377, %v382, %v291
    %v421 = vsel %vm377, %v383, %v293
    %v422 = vsel %vm377, %v384, %v296
    %v423 = vsel %vm377, %v385, %v298
    %v424 = vsel %vm377, %v386, %v301
    %v425 = vsel %vm377, %v387, %v303
    %v426 = vsel %vm377, %v388, %v306
    %v427 = vsel %vm377, %v389, %v308
    %v428 = vsel %vm377, %v390, %v311
    %v429 = vsel %vm377, %v391, %v313
    %v430 = vsel %vm377, %v392, %v316
    %v431 = vsel %vm377, %v393, %v318
    %v432 = vsel %vm377, %v394, %v321
    %v433 = vsel %vm377, %v395, %v323
    %v434 = vsel %vm377, %v396, %v326
    %v435 = vsel %vm377, %v397, %v328
    %v436 = vsel %vm377, %v398, %v331
    %v437 = vsel %vm377, %v399, %v333
    %v438 = vsel %vm377, %v400, %v336
    %v439 = vsel %vm377, %v401, %v338
    %v440 = vsel %vm377, %v402, %v341
    %v441 = vsel %vm377, %v403, %v343
    %v442 = vsel %vm377, %v404, %v346
    %v443 = vsel %vm377, %v405, %v348
    %v444 = vsel %vm377, %v406, %v351
    %v445 = vsel %vm377, %v407, %v353
    %v446 = vsel %vm377, %v408, %v356
    %v447 = vsel %vm377, %v409, %v358
    %v448 = vsel %vm377, %v410, %v361
    %v449 = vsel %vm377, %v411, %v363
    %v450 = vsel %vm377, %v412, %v366
    %v451 = vsel %vm377, %v413, %v368
    %v452 = vsel %vm377, %v414, %v371
    %v453 = vsel %vm377, %v415, %v373
    %v454 = vpack.c.bf16 %v417, %v416
    %v455 = vpack.c.bf16 %v419, %v418
    %v456 = vpack.c.bf16 %v421, %v420
    %v457 = vpack.c.bf16 %v423, %v422
    %v458 = vpack.c.bf16 %v425, %v424
    %v459 = vpack.c.bf16 %v427, %v426
    %v460 = vpack.c.bf16 %v429, %v428
    %v461 = vpack.c.bf16 %v431, %v430
    %v462 = vpack.c.bf16 %v433, %v432
    %v463 = vpack.c.bf16 %v435, %v434
    %v464 = vpack.c.bf16 %v437, %v436
    %v465 = vpack.c.bf16 %v439, %v438
    %v466 = vpack.c.bf16 %v441, %v440
    %v467 = vpack.c.bf16 %v443, %v442
    %v468 = vpack.c.bf16 %v445, %v444
    %v469 = vpack.c.bf16 %v447, %v446
    %v470 = vpack.c.bf16 %v449, %v448
    %v471 = vpack.c.bf16 %v451, %v450
    %v472 = vpack.c.bf16 %v453, %v452
    %v473 = vld [vmem:[%s3] sm:$0xf]
    %v474 = vld [vmem:[%s3 + $0x4] sm:$0xf]
    %v475 = vld [vmem:[%s3 + $0x8] sm:$0xf]
    %v476 = vld [vmem:[%s3 + $0xc] sm:$0xf]
    %v477 = vld [vmem:[%s3 + $0x10] sm:$0xf]
    %v478 = vld [vmem:[%s4] sm:$0x1]
    %v480 = vperm.slane %v478, 0
    %v487 = vunpack.c.l.b16 %v473
    %v488 = vunpack.c.l.b16 %v474
    %v489 = vunpack.c.l.b16 %v475
    %v490 = vunpack.c.l.b16 %v476
    %v491 = vunpack.c.l.b16 %v477
    %v492 = vpack.c.b16 %v488, %v487
    %v493 = vpack.c.b16 %v490, %v489
    %v494 = vpack.c.b16 %v491, %v491
    %vm497 = vcmask 326656
    %v499 = vsel %vm497, %v454, 0
    %v502 = vsel %vm497, %v455, 0
    %v505 = vsel %vm497, %v456, 0
    %v508 = vsel %vm497, %v457, 0
    %v511 = vsel %vm497, %v458, 0
    %v514 = vsel %vm497, %v459, 0
    %v517 = vsel %vm497, %v460, 0
    %v520 = vsel %vm497, %v461, 0
    %v523 = vsel %vm497, %v462, 0
    %v526 = vsel %vm497, %v463, 0
    %v529 = vsel %vm497, %v464, 0
    %v532 = vsel %vm497, %v465, 0
    %v535 = vsel %vm497, %v466, 0
    %v538 = vsel %vm497, %v467, 0
    %v541 = vsel %vm497, %v468, 0
    %v544 = vsel %vm497, %v469, 0
    %v547 = vsel %vm497, %v470, 0
    %v550 = vsel %vm497, %v471, 0
    %v553 = vsel %vm497, %v472, 0
    %v556 = vsel %vm267, %v494, 0
    %558 = vmatpush.bf16.msra.mxu0 0
    %559 = vmatpush.bf16.msra.mxu0 0
    %560 = vmatpush.bf16.msra.mxu0 0
    %561 = vmatpush.bf16.msra.mxu0 0
    %562 = vmatpush.bf16.msra.mxu0 0
    %563 = vmatpush.bf16.msra.mxu0 %v556
    %564 = vmatpush.bf16.msra.mxu0 %v493
    %565 = vmatpush.bf16.msra.mxu0 %v492
    %566 = vmatmul.bf16.gmra.mxu0 %v499
    %v567 = vpop.f32.mrf.mxu0
    %v568 = vadd.f32 %v480, %v567
    %v569 = vpop.f32.mrf.mxu0
    %v570 = vadd.f32 %v480, %v569
    %571 = vmatmul.bf16.gmra.mxu0 %v502
    %v572 = vpop.f32.mrf.mxu0
    %v573 = vadd.f32 %v480, %v572
    %v574 = vpop.f32.mrf.mxu0
    %v575 = vadd.f32 %v480, %v574
    %576 = vmatmul.bf16.gmra.mxu0 %v505
    %v577 = vpop.f32.mrf.mxu0
    %v578 = vadd.f32 %v480, %v577
    %v579 = vpop.f32.mrf.mxu0
    %v580 = vadd.f32 %v480, %v579
    %581 = vmatmul.bf16.gmra.mxu0 %v508
    %v582 = vpop.f32.mrf.mxu0
    %v583 = vadd.f32 %v480, %v582
    %v584 = vpop.f32.mrf.mxu0
    %v585 = vadd.f32 %v480, %v584
    %586 = vmatmul.bf16.gmra.mxu0 %v511
    %v587 = vpop.f32.mrf.mxu0
    %v588 = vadd.f32 %v480, %v587
    %v589 = vpop.f32.mrf.mxu0
    %v590 = vadd.f32 %v480, %v589
    %591 = vmatmul.bf16.gmra.mxu0 %v514
    %v592 = vpop.f32.mrf.mxu0
    %v593 = vadd.f32 %v480, %v592
    %v594 = vpop.f32.mrf.mxu0
    %v595 = vadd.f32 %v480, %v594
    %596 = vmatmul.bf16.gmra.mxu0 %v517
    %v597 = vpop.f32.mrf.mxu0
    %v598 = vadd.f32 %v480, %v597
    %v599 = vpop.f32.mrf.mxu0
    %v600 = vadd.f32 %v480, %v599
    %601 = vmatmul.bf16.gmra.mxu0 %v520
    %v602 = vpop.f32.mrf.mxu0
    %v603 = vadd.f32 %v480, %v602
    %v604 = vpop.f32.mrf.mxu0
    %v605 = vadd.f32 %v480, %v604
    %606 = vmatmul.bf16.gmra.mxu0 %v523
    %v607 = vpop.f32.mrf.mxu0
    %v608 = vadd.f32 %v480, %v607
    %v609 = vpop.f32.mrf.mxu0
    %v610 = vadd.f32 %v480, %v609
    %611 = vmatmul.bf16.gmra.mxu0 %v526
    %v612 = vpop.f32.mrf.mxu0
    %v613 = vadd.f32 %v480, %v612
    %v614 = vpop.f32.mrf.mxu0
    %v615 = vadd.f32 %v480, %v614
    %616 = vmatmul.bf16.gmra.mxu0 %v529
    %v617 = vpop.f32.mrf.mxu0
    %v618 = vadd.f32 %v480, %v617
    %v619 = vpop.f32.mrf.mxu0
    %v620 = vadd.f32 %v480, %v619
    %621 = vmatmul.bf16.gmra.mxu0 %v532
    %v622 = vpop.f32.mrf.mxu0
    %v623 = vadd.f32 %v480, %v622
    %v624 = vpop.f32.mrf.mxu0
    %v625 = vadd.f32 %v480, %v624
    %626 = vmatmul.bf16.gmra.mxu0 %v535
    %v627 = vpop.f32.mrf.mxu0
    %v628 = vadd.f32 %v480, %v627
    %v629 = vpop.f32.mrf.mxu0
    %v630 = vadd.f32 %v480, %v629
    %631 = vmatmul.bf16.gmra.mxu0 %v538
    %v632 = vpop.f32.mrf.mxu0
    %v633 = vadd.f32 %v480, %v632
    %v634 = vpop.f32.mrf.mxu0
    %v635 = vadd.f32 %v480, %v634
    %636 = vmatmul.bf16.gmra.mxu0 %v541
    %v637 = vpop.f32.mrf.mxu0
    %v638 = vadd.f32 %v480, %v637
    %v639 = vpop.f32.mrf.mxu0
    %v640 = vadd.f32 %v480, %v639
    %641 = vmatmul.bf16.gmra.mxu0 %v544
    %v642 = vpop.f32.mrf.mxu0
    %v643 = vadd.f32 %v480, %v642
    %v644 = vpop.f32.mrf.mxu0
    %v645 = vadd.f32 %v480, %v644
    %646 = vmatmul.bf16.gmra.mxu0 %v547
    %v647 = vpop.f32.mrf.mxu0
    %v648 = vadd.f32 %v480, %v647
    %v649 = vpop.f32.mrf.mxu0
    %v650 = vadd.f32 %v480, %v649
    %651 = vmatmul.bf16.gmra.mxu0 %v550
    %v652 = vpop.f32.mrf.mxu0
    %v653 = vadd.f32 %v480, %v652
    %v654 = vpop.f32.mrf.mxu0
    %v655 = vadd.f32 %v480, %v654
    %656 = vmatmul.bf16.gmra.mxu0 %v553
    %v657 = vpop.f32.mrf.mxu0
    %v658 = vadd.f32 %v480, %v657
    %v659 = vpop.f32.mrf.mxu0
    %v660 = vadd.f32 %v480, %v659
    %661 = vdwg.mxu0
    %v662 = vxor.u32 %v568, 2147483648
    %v663 = vxor.u32 %v570, 2147483648
    %v664 = vxor.u32 %v573, 2147483648
    %v665 = vxor.u32 %v575, 2147483648
    %v666 = vxor.u32 %v578, 2147483648
    %v667 = vxor.u32 %v580, 2147483648
    %v668 = vxor.u32 %v583, 2147483648
    %v669 = vxor.u32 %v585, 2147483648
    %v670 = vxor.u32 %v588, 2147483648
    %v671 = vxor.u32 %v590, 2147483648
    %v672 = vxor.u32 %v593, 2147483648
    %v673 = vxor.u32 %v595, 2147483648
    %v674 = vxor.u32 %v598, 2147483648
    %v675 = vxor.u32 %v600, 2147483648
    %v676 = vxor.u32 %v603, 2147483648
    %v677 = vxor.u32 %v605, 2147483648
    %v678 = vxor.u32 %v608, 2147483648
    %v679 = vxor.u32 %v610, 2147483648
    %v680 = vxor.u32 %v613, 2147483648
    %v681 = vxor.u32 %v615, 2147483648
    %v682 = vxor.u32 %v618, 2147483648
    %v683 = vxor.u32 %v620, 2147483648
    %v684 = vxor.u32 %v623, 2147483648
    %v685 = vxor.u32 %v625, 2147483648
    %v686 = vxor.u32 %v628, 2147483648
    %v687 = vxor.u32 %v630, 2147483648
    %v688 = vxor.u32 %v633, 2147483648
    %v689 = vxor.u32 %v635, 2147483648
    %v690 = vxor.u32 %v638, 2147483648
    %v691 = vxor.u32 %v640, 2147483648
    %v692 = vxor.u32 %v643, 2147483648
    %v693 = vxor.u32 %v645, 2147483648
    %v694 = vxor.u32 %v648, 2147483648
    %v695 = vxor.u32 %v650, 2147483648
    %v696 = vxor.u32 %v653, 2147483648
    %v697 = vxor.u32 %v655, 2147483648
    %v698 = vxor.u32 %v658, 2147483648
    %v699 = vxor.u32 %v660, 2147483648
    %v700 = vmul.f32 %v662, 1.442695
    %v701 = vpow.pop %v700
    %v702 = vmul.f32 %v663, 1.442695
    %v703 = vpow.pop %v702
    %v704 = vmul.f32 %v664, 1.442695
    %v705 = vpow.pop %v704
    %v706 = vmul.f32 %v665, 1.442695
    %v707 = vpow.pop %v706
    %v708 = vmul.f32 %v666, 1.442695
    %v709 = vpow.pop %v708
    %v710 = vmul.f32 %v667, 1.442695
    %v711 = vpow.pop %v710
    %v712 = vmul.f32 %v668, 1.442695
    %v713 = vpow.pop %v712
    %v714 = vmul.f32 %v669, 1.442695
    %v715 = vpow.pop %v714
    %v716 = vmul.f32 %v670, 1.442695
    %v717 = vpow.pop %v716
    %v718 = vmul.f32 %v671, 1.442695
    %v719 = vpow.pop %v718
    %v720 = vmul.f32 %v672, 1.442695
    %v721 = vpow.pop %v720
    %v722 = vmul.f32 %v673, 1.442695
    %v723 = vpow.pop %v722
    %v724 = vmul.f32 %v674, 1.442695
    %v725 = vpow.pop %v724
    %v726 = vmul.f32 %v675, 1.442695
    %v727 = vpow.pop %v726
    %v728 = vmul.f32 %v676, 1.442695
    %v729 = vpow.pop %v728
    %v730 = vmul.f32 %v677, 1.442695
    %v731 = vpow.pop %v730
    %v732 = vmul.f32 %v678, 1.442695
    %v733 = vpow.pop %v732
    %v734 = vmul.f32 %v679, 1.442695
    %v735 = vpow.pop %v734
    %v736 = vmul.f32 %v680, 1.442695
    %v737 = vpow.pop %v736
    %v738 = vmul.f32 %v681, 1.442695
    %v739 = vpow.pop %v738
    %v740 = vmul.f32 %v682, 1.442695
    %v741 = vpow.pop %v740
    %v742 = vmul.f32 %v683, 1.442695
    %v743 = vpow.pop %v742
    %v744 = vmul.f32 %v684, 1.442695
    %v745 = vpow.pop %v744
    %v746 = vmul.f32 %v685, 1.442695
    %v747 = vpow.pop %v746
    %v748 = vmul.f32 %v686, 1.442695
    %v749 = vpow.pop %v748
    %v750 = vmul.f32 %v687, 1.442695
    %v751 = vpow.pop %v750
    %v752 = vmul.f32 %v688, 1.442695
    %v753 = vpow.pop %v752
    %v754 = vmul.f32 %v689, 1.442695
    %v755 = vpow.pop %v754
    %v756 = vmul.f32 %v690, 1.442695
    %v757 = vpow.pop %v756
    %v758 = vmul.f32 %v691, 1.442695
    %v759 = vpow.pop %v758
    %v760 = vmul.f32 %v692, 1.442695
    %v761 = vpow.pop %v760
    %v762 = vmul.f32 %v693, 1.442695
    %v763 = vpow.pop %v762
    %v764 = vmul.f32 %v694, 1.442695
    %v765 = vpow.pop %v764
    %v766 = vmul.f32 %v695, 1.442695
    %v767 = vpow.pop %v766
    %v768 = vmul.f32 %v696, 1.442695
    %v769 = vpow.pop %v768
    %v770 = vmul.f32 %v697, 1.442695
    %v771 = vpow.pop %v770
    %v772 = vmul.f32 %v698, 1.442695
    %v773 = vpow.pop %v772
    %v774 = vmul.f32 %v699, 1.442695
    %v775 = vpow.pop %v774
    %v776 = vadd.f32 %v701, 1.0
    %v777 = vadd.f32 %v703, 1.0
    %v778 = vadd.f32 %v705, 1.0
    %v779 = vadd.f32 %v707, 1.0
    %v780 = vadd.f32 %v709, 1.0
    %v781 = vadd.f32 %v711, 1.0
    %v782 = vadd.f32 %v713, 1.0
    %v783 = vadd.f32 %v715, 1.0
    %v784 = vadd.f32 %v717, 1.0
    %v785 = vadd.f32 %v719, 1.0
    %v786 = vadd.f32 %v721, 1.0
    %v787 = vadd.f32 %v723, 1.0
    %v788 = vadd.f32 %v725, 1.0
    %v789 = vadd.f32 %v727, 1.0
    %v790 = vadd.f32 %v729, 1.0
    %v791 = vadd.f32 %v731, 1.0
    %v792 = vadd.f32 %v733, 1.0
    %v793 = vadd.f32 %v735, 1.0
    %v794 = vadd.f32 %v737, 1.0
    %v795 = vadd.f32 %v739, 1.0
    %v796 = vadd.f32 %v741, 1.0
    %v797 = vadd.f32 %v743, 1.0
    %v798 = vadd.f32 %v745, 1.0
    %v799 = vadd.f32 %v747, 1.0
    %v800 = vadd.f32 %v749, 1.0
    %v801 = vadd.f32 %v751, 1.0
    %v802 = vadd.f32 %v753, 1.0
    %v803 = vadd.f32 %v755, 1.0
    %v804 = vadd.f32 %v757, 1.0
    %v805 = vadd.f32 %v759, 1.0
    %v806 = vadd.f32 %v761, 1.0
    %v807 = vadd.f32 %v763, 1.0
    %v808 = vadd.f32 %v765, 1.0
    %v809 = vadd.f32 %v767, 1.0
    %v810 = vadd.f32 %v769, 1.0
    %v811 = vadd.f32 %v771, 1.0
    %v812 = vadd.f32 %v773, 1.0
    %v813 = vadd.f32 %v775, 1.0
    %v814 = vrcp.pop %v776
    %v815 = vmul.f32 %v776, %v814
    %v816 = vsub.f32 1.0, %v815
    %v817 = vmul.f32 %v814, %v816
    %v818 = vadd.f32 %v814, %v817
    %vm819 = vweird.f32 %v776
    %vm820 = vweird.f32 %v814
    %vm821 = vmor %vm819, %vm820
    %v822 = vsel %vm821, %v814, %v818
    %v823 = vand.u32 2147483647, %v776
    %vm824 = vcmp.eq.f32.partialorder %v823, 8.507059e+37
    %v825 = vand.u32 %v776, 2147483648
    %v826 = vor.u32 1.1754944e-38, %v825
    %v827 = vsel %vm824, %v826, %v822
    %v828 = vmul.f32 1.0, %v827
    %v829 = vrcp.pop %v777
    %v830 = vmul.f32 %v777, %v829
    %v831 = vsub.f32 1.0, %v830
    %v832 = vmul.f32 %v829, %v831
    %v833 = vadd.f32 %v829, %v832
    %vm834 = vweird.f32 %v777
    %vm835 = vweird.f32 %v829
    %vm836 = vmor %vm834, %vm835
    %v837 = vsel %vm836, %v829, %v833
    %v838 = vand.u32 2147483647, %v777
    %vm839 = vcmp.eq.f32.partialorder %v838, 8.507059e+37
    %v840 = vand.u32 %v777, 2147483648
    %v841 = vor.u32 1.1754944e-38, %v840
    %v842 = vsel %vm839, %v841, %v837
    %v843 = vmul.f32 1.0, %v842
    %v844 = vrcp.pop %v778
    %v845 = vmul.f32 %v778, %v844
    %v846 = vsub.f32 1.0, %v845
    %v847 = vmul.f32 %v844, %v846
    %v848 = vadd.f32 %v844, %v847
    %vm849 = vweird.f32 %v778
    %vm850 = vweird.f32 %v844
    %vm851 = vmor %vm849, %vm850
    %v852 = vsel %vm851, %v844, %v848
    %v853 = vand.u32 2147483647, %v778
    %vm854 = vcmp.eq.f32.partialorder %v853, 8.507059e+37
    %v855 = vand.u32 %v778, 2147483648
    %v856 = vor.u32 1.1754944e-38, %v855
    %v857 = vsel %vm854, %v856, %v852
    %v858 = vmul.f32 1.0, %v857
    %v859 = vrcp.pop %v779
    %v860 = vmul.f32 %v779, %v859
    %v861 = vsub.f32 1.0, %v860
    %v862 = vmul.f32 %v859, %v861
    %v863 = vadd.f32 %v859, %v862
    %vm864 = vweird.f32 %v779
    %vm865 = vweird.f32 %v859
    %vm866 = vmor %vm864, %vm865
    %v867 = vsel %vm866, %v859, %v863
    %v868 = vand.u32 2147483647, %v779
    %vm869 = vcmp.eq.f32.partialorder %v868, 8.507059e+37
    %v870 = vand.u32 %v779, 2147483648
    %v871 = vor.u32 1.1754944e-38, %v870
    %v872 = vsel %vm869, %v871, %v867
    %v873 = vmul.f32 1.0, %v872
    %v874 = vrcp.pop %v780
    %v875 = vmul.f32 %v780, %v874
    %v876 = vsub.f32 1.0, %v875
    %v877 = vmul.f32 %v874, %v876
    %v878 = vadd.f32 %v874, %v877
    %vm879 = vweird.f32 %v780
    %vm880 = vweird.f32 %v874
    %vm881 = vmor %vm879, %vm880
    %v882 = vsel %vm881, %v874, %v878
    %v883 = vand.u32 2147483647, %v780
    %vm884 = vcmp.eq.f32.partialorder %v883, 8.507059e+37
    %v885 = vand.u32 %v780, 2147483648
    %v886 = vor.u32 1.1754944e-38, %v885
    %v887 = vsel %vm884, %v886, %v882
    %v888 = vmul.f32 1.0, %v887
    %v889 = vrcp.pop %v781
    %v890 = vmul.f32 %v781, %v889
    %v891 = vsub.f32 1.0, %v890
    %v892 = vmul.f32 %v889, %v891
    %v893 = vadd.f32 %v889, %v892
    %vm894 = vweird.f32 %v781
    %vm895 = vweird.f32 %v889
    %vm896 = vmor %vm894, %vm895
    %v897 = vsel %vm896, %v889, %v893
    %v898 = vand.u32 2147483647, %v781
    %vm899 = vcmp.eq.f32.partialorder %v898, 8.507059e+37
    %v900 = vand.u32 %v781, 2147483648
    %v901 = vor.u32 1.1754944e-38, %v900
    %v902 = vsel %vm899, %v901, %v897
    %v903 = vmul.f32 1.0, %v902
    %v904 = vrcp.pop %v782
    %v905 = vmul.f32 %v782, %v904
    %v906 = vsub.f32 1.0, %v905
    %v907 = vmul.f32 %v904, %v906
    %v908 = vadd.f32 %v904, %v907
    %vm909 = vweird.f32 %v782
    %vm910 = vweird.f32 %v904
    %vm911 = vmor %vm909, %vm910
    %v912 = vsel %vm911, %v904, %v908
    %v913 = vand.u32 2147483647, %v782
    %vm914 = vcmp.eq.f32.partialorder %v913, 8.507059e+37
    %v915 = vand.u32 %v782, 2147483648
    %v916 = vor.u32 1.1754944e-38, %v915
    %v917 = vsel %vm914, %v916, %v912
    %v918 = vmul.f32 1.0, %v917
    %v919 = vrcp.pop %v783
    %v920 = vmul.f32 %v783, %v919
    %v921 = vsub.f32 1.0, %v920
    %v922 = vmul.f32 %v919, %v921
    %v923 = vadd.f32 %v919, %v922
    %vm924 = vweird.f32 %v783
    %vm925 = vweird.f32 %v919
    %vm926 = vmor %vm924, %vm925
    %v927 = vsel %vm926, %v919, %v923
    %v928 = vand.u32 2147483647, %v783
    %vm929 = vcmp.eq.f32.partialorder %v928, 8.507059e+37
    %v930 = vand.u32 %v783, 2147483648
    %v931 = vor.u32 1.1754944e-38, %v930
    %v932 = vsel %vm929, %v931, %v927
    %v933 = vmul.f32 1.0, %v932
    %v934 = vrcp.pop %v784
    %v935 = vmul.f32 %v784, %v934
    %v936 = vsub.f32 1.0, %v935
    %v937 = vmul.f32 %v934, %v936
    %v938 = vadd.f32 %v934, %v937
    %vm939 = vweird.f32 %v784
    %vm940 = vweird.f32 %v934
    %vm941 = vmor %vm939, %vm940
    %v942 = vsel %vm941, %v934, %v938
    %v943 = vand.u32 2147483647, %v784
    %vm944 = vcmp.eq.f32.partialorder %v943, 8.507059e+37
    %v945 = vand.u32 %v784, 2147483648
    %v946 = vor.u32 1.1754944e-38, %v945
    %v947 = vsel %vm944, %v946, %v942
    %v948 = vmul.f32 1.0, %v947
    %v949 = vrcp.pop %v785
    %v950 = vmul.f32 %v785, %v949
    %v951 = vsub.f32 1.0, %v950
    %v952 = vmul.f32 %v949, %v951
    %v953 = vadd.f32 %v949, %v952
    %vm954 = vweird.f32 %v785
    %vm955 = vweird.f32 %v949
    %vm956 = vmor %vm954, %vm955
    %v957 = vsel %vm956, %v949, %v953
    %v958 = vand.u32 2147483647, %v785
    %vm959 = vcmp.eq.f32.partialorder %v958, 8.507059e+37
    %v960 = vand.u32 %v785, 2147483648
    %v961 = vor.u32 1.1754944e-38, %v960
    %v962 = vsel %vm959, %v961, %v957
    %v963 = vmul.f32 1.0, %v962
    %v964 = vrcp.pop %v786
    %v965 = vmul.f32 %v786, %v964
    %v966 = vsub.f32 1.0, %v965
    %v967 = vmul.f32 %v964, %v966
    %v968 = vadd.f32 %v964, %v967
    %vm969 = vweird.f32 %v786
    %vm970 = vweird.f32 %v964
    %vm971 = vmor %vm969, %vm970
    %v972 = vsel %vm971, %v964, %v968
    %v973 = vand.u32 2147483647, %v786
    %vm974 = vcmp.eq.f32.partialorder %v973, 8.507059e+37
    %v975 = vand.u32 %v786, 2147483648
    %v976 = vor.u32 1.1754944e-38, %v975
    %v977 = vsel %vm974, %v976, %v972
    %v978 = vmul.f32 1.0, %v977
    %v979 = vrcp.pop %v787
    %v980 = vmul.f32 %v787, %v979
    %v981 = vsub.f32 1.0, %v980
    %v982 = vmul.f32 %v979, %v981
    %v983 = vadd.f32 %v979, %v982
    %vm984 = vweird.f32 %v787
    %vm985 = vweird.f32 %v979
    %vm986 = vmor %vm984, %vm985
    %v987 = vsel %vm986, %v979, %v983
    %v988 = vand.u32 2147483647, %v787
    %vm989 = vcmp.eq.f32.partialorder %v988, 8.507059e+37
    %v990 = vand.u32 %v787, 2147483648
    %v991 = vor.u32 1.1754944e-38, %v990
    %v992 = vsel %vm989, %v991, %v987
    %v993 = vmul.f32 1.0, %v992
    %v994 = vrcp.pop %v788
    %v995 = vmul.f32 %v788, %v994
    %v996 = vsub.f32 1.0, %v995
    %v997 = vmul.f32 %v994, %v996
    %v998 = vadd.f32 %v994, %v997
    %vm999 = vweird.f32 %v788
    %vm1000 = vweird.f32 %v994
    %vm1001 = vmor %vm999, %vm1000
    %v1002 = vsel %vm1001, %v994, %v998
    %v1003 = vand.u32 2147483647, %v788
    %vm1004 = vcmp.eq.f32.partialorder %v1003, 8.507059e+37
    %v1005 = vand.u32 %v788, 2147483648
    %v1006 = vor.u32 1.1754944e-38, %v1005
    %v1007 = vsel %vm1004, %v1006, %v1002
    %v1008 = vmul.f32 1.0, %v1007
    %v1009 = vrcp.pop %v789
    %v1010 = vmul.f32 %v789, %v1009
    %v1011 = vsub.f32 1.0, %v1010
    %v1012 = vmul.f32 %v1009, %v1011
    %v1013 = vadd.f32 %v1009, %v1012
    %vm1014 = vweird.f32 %v789
    %vm1015 = vweird.f32 %v1009
    %vm1016 = vmor %vm1014, %vm1015
    %v1017 = vsel %vm1016, %v1009, %v1013
    %v1018 = vand.u32 2147483647, %v789
    %vm1019 = vcmp.eq.f32.partialorder %v1018, 8.507059e+37
    %v1020 = vand.u32 %v789, 2147483648
    %v1021 = vor.u32 1.1754944e-38, %v1020
    %v1022 = vsel %vm1019, %v1021, %v1017
    %v1023 = vmul.f32 1.0, %v1022
    %v1024 = vrcp.pop %v790
    %v1025 = vmul.f32 %v790, %v1024
    %v1026 = vsub.f32 1.0, %v1025
    %v1027 = vmul.f32 %v1024, %v1026
    %v1028 = vadd.f32 %v1024, %v1027
    %vm1029 = vweird.f32 %v790
    %vm1030 = vweird.f32 %v1024
    %vm1031 = vmor %vm1029, %vm1030
    %v1032 = vsel %vm1031, %v1024, %v1028
    %v1033 = vand.u32 2147483647, %v790
    %vm1034 = vcmp.eq.f32.partialorder %v1033, 8.507059e+37
    %v1035 = vand.u32 %v790, 2147483648
    %v1036 = vor.u32 1.1754944e-38, %v1035
    %v1037 = vsel %vm1034, %v1036, %v1032
    %v1038 = vmul.f32 1.0, %v1037
    %v1039 = vrcp.pop %v791
    %v1040 = vmul.f32 %v791, %v1039
    %v1041 = vsub.f32 1.0, %v1040
    %v1042 = vmul.f32 %v1039, %v1041
    %v1043 = vadd.f32 %v1039, %v1042
    %vm1044 = vweird.f32 %v791
    %vm1045 = vweird.f32 %v1039
    %vm1046 = vmor %vm1044, %vm1045
    %v1047 = vsel %vm1046, %v1039, %v1043
    %v1048 = vand.u32 2147483647, %v791
    %vm1049 = vcmp.eq.f32.partialorder %v1048, 8.507059e+37
    %v1050 = vand.u32 %v791, 2147483648
    %v1051 = vor.u32 1.1754944e-38, %v1050
    %v1052 = vsel %vm1049, %v1051, %v1047
    %v1053 = vmul.f32 1.0, %v1052
    %v1054 = vrcp.pop %v792
    %v1055 = vmul.f32 %v792, %v1054
    %v1056 = vsub.f32 1.0, %v1055
    %v1057 = vmul.f32 %v1054, %v1056
    %v1058 = vadd.f32 %v1054, %v1057
    %vm1059 = vweird.f32 %v792
    %vm1060 = vweird.f32 %v1054
    %vm1061 = vmor %vm1059, %vm1060
    %v1062 = vsel %vm1061, %v1054, %v1058
    %v1063 = vand.u32 2147483647, %v792
    %vm1064 = vcmp.eq.f32.partialorder %v1063, 8.507059e+37
    %v1065 = vand.u32 %v792, 2147483648
    %v1066 = vor.u32 1.1754944e-38, %v1065
    %v1067 = vsel %vm1064, %v1066, %v1062
    %v1068 = vmul.f32 1.0, %v1067
    %v1069 = vrcp.pop %v793
    %v1070 = vmul.f32 %v793, %v1069
    %v1071 = vsub.f32 1.0, %v1070
    %v1072 = vmul.f32 %v1069, %v1071
    %v1073 = vadd.f32 %v1069, %v1072
    %vm1074 = vweird.f32 %v793
    %vm1075 = vweird.f32 %v1069
    %vm1076 = vmor %vm1074, %vm1075
    %v1077 = vsel %vm1076, %v1069, %v1073
    %v1078 = vand.u32 2147483647, %v793
    %vm1079 = vcmp.eq.f32.partialorder %v1078, 8.507059e+37
    %v1080 = vand.u32 %v793, 2147483648
    %v1081 = vor.u32 1.1754944e-38, %v1080
    %v1082 = vsel %vm1079, %v1081, %v1077
    %v1083 = vmul.f32 1.0, %v1082
    %v1084 = vrcp.pop %v794
    %v1085 = vmul.f32 %v794, %v1084
    %v1086 = vsub.f32 1.0, %v1085
    %v1087 = vmul.f32 %v1084, %v1086
    %v1088 = vadd.f32 %v1084, %v1087
    %vm1089 = vweird.f32 %v794
    %vm1090 = vweird.f32 %v1084
    %vm1091 = vmor %vm1089, %vm1090
    %v1092 = vsel %vm1091, %v1084, %v1088
    %v1093 = vand.u32 2147483647, %v794
    %vm1094 = vcmp.eq.f32.partialorder %v1093, 8.507059e+37
    %v1095 = vand.u32 %v794, 2147483648
    %v1096 = vor.u32 1.1754944e-38, %v1095
    %v1097 = vsel %vm1094, %v1096, %v1092
    %v1098 = vmul.f32 1.0, %v1097
    %v1099 = vrcp.pop %v795
    %v1100 = vmul.f32 %v795, %v1099
    %v1101 = vsub.f32 1.0, %v1100
    %v1102 = vmul.f32 %v1099, %v1101
    %v1103 = vadd.f32 %v1099, %v1102
    %vm1104 = vweird.f32 %v795
    %vm1105 = vweird.f32 %v1099
    %vm1106 = vmor %vm1104, %vm1105
    %v1107 = vsel %vm1106, %v1099, %v1103
    %v1108 = vand.u32 2147483647, %v795
    %vm1109 = vcmp.eq.f32.partialorder %v1108, 8.507059e+37
    %v1110 = vand.u32 %v795, 2147483648
    %v1111 = vor.u32 1.1754944e-38, %v1110
    %v1112 = vsel %vm1109, %v1111, %v1107
    %v1113 = vmul.f32 1.0, %v1112
    %v1114 = vrcp.pop %v796
    %v1115 = vmul.f32 %v796, %v1114
    %v1116 = vsub.f32 1.0, %v1115
    %v1117 = vmul.f32 %v1114, %v1116
    %v1118 = vadd.f32 %v1114, %v1117
    %vm1119 = vweird.f32 %v796
    %vm1120 = vweird.f32 %v1114
    %vm1121 = vmor %vm1119, %vm1120
    %v1122 = vsel %vm1121, %v1114, %v1118
    %v1123 = vand.u32 2147483647, %v796
    %vm1124 = vcmp.eq.f32.partialorder %v1123, 8.507059e+37
    %v1125 = vand.u32 %v796, 2147483648
    %v1126 = vor.u32 1.1754944e-38, %v1125
    %v1127 = vsel %vm1124, %v1126, %v1122
    %v1128 = vmul.f32 1.0, %v1127
    %v1129 = vrcp.pop %v797
    %v1130 = vmul.f32 %v797, %v1129
    %v1131 = vsub.f32 1.0, %v1130
    %v1132 = vmul.f32 %v1129, %v1131
    %v1133 = vadd.f32 %v1129, %v1132
    %vm1134 = vweird.f32 %v797
    %vm1135 = vweird.f32 %v1129
    %vm1136 = vmor %vm1134, %vm1135
    %v1137 = vsel %vm1136, %v1129, %v1133
    %v1138 = vand.u32 2147483647, %v797
    %vm1139 = vcmp.eq.f32.partialorder %v1138, 8.507059e+37
    %v1140 = vand.u32 %v797, 2147483648
    %v1141 = vor.u32 1.1754944e-38, %v1140
    %v1142 = vsel %vm1139, %v1141, %v1137
    %v1143 = vmul.f32 1.0, %v1142
    %v1144 = vrcp.pop %v798
    %v1145 = vmul.f32 %v798, %v1144
    %v1146 = vsub.f32 1.0, %v1145
    %v1147 = vmul.f32 %v1144, %v1146
    %v1148 = vadd.f32 %v1144, %v1147
    %vm1149 = vweird.f32 %v798
    %vm1150 = vweird.f32 %v1144
    %vm1151 = vmor %vm1149, %vm1150
    %v1152 = vsel %vm1151, %v1144, %v1148
    %v1153 = vand.u32 2147483647, %v798
    %vm1154 = vcmp.eq.f32.partialorder %v1153, 8.507059e+37
    %v1155 = vand.u32 %v798, 2147483648
    %v1156 = vor.u32 1.1754944e-38, %v1155
    %v1157 = vsel %vm1154, %v1156, %v1152
    %v1158 = vmul.f32 1.0, %v1157
    %v1159 = vrcp.pop %v799
    %v1160 = vmul.f32 %v799, %v1159
    %v1161 = vsub.f32 1.0, %v1160
    %v1162 = vmul.f32 %v1159, %v1161
    %v1163 = vadd.f32 %v1159, %v1162
    %vm1164 = vweird.f32 %v799
    %vm1165 = vweird.f32 %v1159
    %vm1166 = vmor %vm1164, %vm1165
    %v1167 = vsel %vm1166, %v1159, %v1163
    %v1168 = vand.u32 2147483647, %v799
    %vm1169 = vcmp.eq.f32.partialorder %v1168, 8.507059e+37
    %v1170 = vand.u32 %v799, 2147483648
    %v1171 = vor.u32 1.1754944e-38, %v1170
    %v1172 = vsel %vm1169, %v1171, %v1167
    %v1173 = vmul.f32 1.0, %v1172
    %v1174 = vrcp.pop %v800
    %v1175 = vmul.f32 %v800, %v1174
    %v1176 = vsub.f32 1.0, %v1175
    %v1177 = vmul.f32 %v1174, %v1176
    %v1178 = vadd.f32 %v1174, %v1177
    %vm1179 = vweird.f32 %v800
    %vm1180 = vweird.f32 %v1174
    %vm1181 = vmor %vm1179, %vm1180
    %v1182 = vsel %vm1181, %v1174, %v1178
    %v1183 = vand.u32 2147483647, %v800
    %vm1184 = vcmp.eq.f32.partialorder %v1183, 8.507059e+37
    %v1185 = vand.u32 %v800, 2147483648
    %v1186 = vor.u32 1.1754944e-38, %v1185
    %v1187 = vsel %vm1184, %v1186, %v1182
    %v1188 = vmul.f32 1.0, %v1187
    %v1189 = vrcp.pop %v801
    %v1190 = vmul.f32 %v801, %v1189
    %v1191 = vsub.f32 1.0, %v1190
    %v1192 = vmul.f32 %v1189, %v1191
    %v1193 = vadd.f32 %v1189, %v1192
    %vm1194 = vweird.f32 %v801
    %vm1195 = vweird.f32 %v1189
    %vm1196 = vmor %vm1194, %vm1195
    %v1197 = vsel %vm1196, %v1189, %v1193
    %v1198 = vand.u32 2147483647, %v801
    %vm1199 = vcmp.eq.f32.partialorder %v1198, 8.507059e+37
    %v1200 = vand.u32 %v801, 2147483648
    %v1201 = vor.u32 1.1754944e-38, %v1200
    %v1202 = vsel %vm1199, %v1201, %v1197
    %v1203 = vmul.f32 1.0, %v1202
    %v1204 = vrcp.pop %v802
    %v1205 = vmul.f32 %v802, %v1204
    %v1206 = vsub.f32 1.0, %v1205
    %v1207 = vmul.f32 %v1204, %v1206
    %v1208 = vadd.f32 %v1204, %v1207
    %vm1209 = vweird.f32 %v802
    %vm1210 = vweird.f32 %v1204
    %vm1211 = vmor %vm1209, %vm1210
    %v1212 = vsel %vm1211, %v1204, %v1208
    %v1213 = vand.u32 2147483647, %v802
    %vm1214 = vcmp.eq.f32.partialorder %v1213, 8.507059e+37
    %v1215 = vand.u32 %v802, 2147483648
    %v1216 = vor.u32 1.1754944e-38, %v1215
    %v1217 = vsel %vm1214, %v1216, %v1212
    %v1218 = vmul.f32 1.0, %v1217
    %v1219 = vrcp.pop %v803
    %v1220 = vmul.f32 %v803, %v1219
    %v1221 = vsub.f32 1.0, %v1220
    %v1222 = vmul.f32 %v1219, %v1221
    %v1223 = vadd.f32 %v1219, %v1222
    %vm1224 = vweird.f32 %v803
    %vm1225 = vweird.f32 %v1219
    %vm1226 = vmor %vm1224, %vm1225
    %v1227 = vsel %vm1226, %v1219, %v1223
    %v1228 = vand.u32 2147483647, %v803
    %vm1229 = vcmp.eq.f32.partialorder %v1228, 8.507059e+37
    %v1230 = vand.u32 %v803, 2147483648
    %v1231 = vor.u32 1.1754944e-38, %v1230
    %v1232 = vsel %vm1229, %v1231, %v1227
    %v1233 = vmul.f32 1.0, %v1232
    %v1234 = vrcp.pop %v804
    %v1235 = vmul.f32 %v804, %v1234
    %v1236 = vsub.f32 1.0, %v1235
    %v1237 = vmul.f32 %v1234, %v1236
    %v1238 = vadd.f32 %v1234, %v1237
    %vm1239 = vweird.f32 %v804
    %vm1240 = vweird.f32 %v1234
    %vm1241 = vmor %vm1239, %vm1240
    %v1242 = vsel %vm1241, %v1234, %v1238
    %v1243 = vand.u32 2147483647, %v804
    %vm1244 = vcmp.eq.f32.partialorder %v1243, 8.507059e+37
    %v1245 = vand.u32 %v804, 2147483648
    %v1246 = vor.u32 1.1754944e-38, %v1245
    %v1247 = vsel %vm1244, %v1246, %v1242
    %v1248 = vmul.f32 1.0, %v1247
    %v1249 = vrcp.pop %v805
    %v1250 = vmul.f32 %v805, %v1249
    %v1251 = vsub.f32 1.0, %v1250
    %v1252 = vmul.f32 %v1249, %v1251
    %v1253 = vadd.f32 %v1249, %v1252
    %vm1254 = vweird.f32 %v805
    %vm1255 = vweird.f32 %v1249
    %vm1256 = vmor %vm1254, %vm1255
    %v1257 = vsel %vm1256, %v1249, %v1253
    %v1258 = vand.u32 2147483647, %v805
    %vm1259 = vcmp.eq.f32.partialorder %v1258, 8.507059e+37
    %v1260 = vand.u32 %v805, 2147483648
    %v1261 = vor.u32 1.1754944e-38, %v1260
    %v1262 = vsel %vm1259, %v1261, %v1257
    %v1263 = vmul.f32 1.0, %v1262
    %v1264 = vrcp.pop %v806
    %v1265 = vmul.f32 %v806, %v1264
    %v1266 = vsub.f32 1.0, %v1265
    %v1267 = vmul.f32 %v1264, %v1266
    %v1268 = vadd.f32 %v1264, %v1267
    %vm1269 = vweird.f32 %v806
    %vm1270 = vweird.f32 %v1264
    %vm1271 = vmor %vm1269, %vm1270
    %v1272 = vsel %vm1271, %v1264, %v1268
    %v1273 = vand.u32 2147483647, %v806
    %vm1274 = vcmp.eq.f32.partialorder %v1273, 8.507059e+37
    %v1275 = vand.u32 %v806, 2147483648
    %v1276 = vor.u32 1.1754944e-38, %v1275
    %v1277 = vsel %vm1274, %v1276, %v1272
    %v1278 = vmul.f32 1.0, %v1277
    %v1279 = vrcp.pop %v807
    %v1280 = vmul.f32 %v807, %v1279
    %v1281 = vsub.f32 1.0, %v1280
    %v1282 = vmul.f32 %v1279, %v1281
    %v1283 = vadd.f32 %v1279, %v1282
    %vm1284 = vweird.f32 %v807
    %vm1285 = vweird.f32 %v1279
    %vm1286 = vmor %vm1284, %vm1285
    %v1287 = vsel %vm1286, %v1279, %v1283
    %v1288 = vand.u32 2147483647, %v807
    %vm1289 = vcmp.eq.f32.partialorder %v1288, 8.507059e+37
    %v1290 = vand.u32 %v807, 2147483648
    %v1291 = vor.u32 1.1754944e-38, %v1290
    %v1292 = vsel %vm1289, %v1291, %v1287
    %v1293 = vmul.f32 1.0, %v1292
    %v1294 = vrcp.pop %v808
    %v1295 = vmul.f32 %v808, %v1294
    %v1296 = vsub.f32 1.0, %v1295
    %v1297 = vmul.f32 %v1294, %v1296
    %v1298 = vadd.f32 %v1294, %v1297
    %vm1299 = vweird.f32 %v808
    %vm1300 = vweird.f32 %v1294
    %vm1301 = vmor %vm1299, %vm1300
    %v1302 = vsel %vm1301, %v1294, %v1298
    %v1303 = vand.u32 2147483647, %v808
    %vm1304 = vcmp.eq.f32.partialorder %v1303, 8.507059e+37
    %v1305 = vand.u32 %v808, 2147483648
    %v1306 = vor.u32 1.1754944e-38, %v1305
    %v1307 = vsel %vm1304, %v1306, %v1302
    %v1308 = vmul.f32 1.0, %v1307
    %v1309 = vrcp.pop %v809
    %v1310 = vmul.f32 %v809, %v1309
    %v1311 = vsub.f32 1.0, %v1310
    %v1312 = vmul.f32 %v1309, %v1311
    %v1313 = vadd.f32 %v1309, %v1312
    %vm1314 = vweird.f32 %v809
    %vm1315 = vweird.f32 %v1309
    %vm1316 = vmor %vm1314, %vm1315
    %v1317 = vsel %vm1316, %v1309, %v1313
    %v1318 = vand.u32 2147483647, %v809
    %vm1319 = vcmp.eq.f32.partialorder %v1318, 8.507059e+37
    %v1320 = vand.u32 %v809, 2147483648
    %v1321 = vor.u32 1.1754944e-38, %v1320
    %v1322 = vsel %vm1319, %v1321, %v1317
    %v1323 = vmul.f32 1.0, %v1322
    %v1324 = vrcp.pop %v810
    %v1325 = vmul.f32 %v810, %v1324
    %v1326 = vsub.f32 1.0, %v1325
    %v1327 = vmul.f32 %v1324, %v1326
    %v1328 = vadd.f32 %v1324, %v1327
    %vm1329 = vweird.f32 %v810
    %vm1330 = vweird.f32 %v1324
    %vm1331 = vmor %vm1329, %vm1330
    %v1332 = vsel %vm1331, %v1324, %v1328
    %v1333 = vand.u32 2147483647, %v810
    %vm1334 = vcmp.eq.f32.partialorder %v1333, 8.507059e+37
    %v1335 = vand.u32 %v810, 2147483648
    %v1336 = vor.u32 1.1754944e-38, %v1335
    %v1337 = vsel %vm1334, %v1336, %v1332
    %v1338 = vmul.f32 1.0, %v1337
    %v1339 = vrcp.pop %v811
    %v1340 = vmul.f32 %v811, %v1339
    %v1341 = vsub.f32 1.0, %v1340
    %v1342 = vmul.f32 %v1339, %v1341
    %v1343 = vadd.f32 %v1339, %v1342
    %vm1344 = vweird.f32 %v811
    %vm1345 = vweird.f32 %v1339
    %vm1346 = vmor %vm1344, %vm1345
    %v1347 = vsel %vm1346, %v1339, %v1343
    %v1348 = vand.u32 2147483647, %v811
    %vm1349 = vcmp.eq.f32.partialorder %v1348, 8.507059e+37
    %v1350 = vand.u32 %v811, 2147483648
    %v1351 = vor.u32 1.1754944e-38, %v1350
    %v1352 = vsel %vm1349, %v1351, %v1347
    %v1353 = vmul.f32 1.0, %v1352
    %v1354 = vrcp.pop %v812
    %v1355 = vmul.f32 %v812, %v1354
    %v1356 = vsub.f32 1.0, %v1355
    %v1357 = vmul.f32 %v1354, %v1356
    %v1358 = vadd.f32 %v1354, %v1357
    %vm1359 = vweird.f32 %v812
    %vm1360 = vweird.f32 %v1354
    %vm1361 = vmor %vm1359, %vm1360
    %v1362 = vsel %vm1361, %v1354, %v1358
    %v1363 = vand.u32 2147483647, %v812
    %vm1364 = vcmp.eq.f32.partialorder %v1363, 8.507059e+37
    %v1365 = vand.u32 %v812, 2147483648
    %v1366 = vor.u32 1.1754944e-38, %v1365
    %v1367 = vsel %vm1364, %v1366, %v1362
    %v1368 = vmul.f32 1.0, %v1367
    %v1369 = vrcp.pop %v813
    %v1370 = vmul.f32 %v813, %v1369
    %v1371 = vsub.f32 1.0, %v1370
    %v1372 = vmul.f32 %v1369, %v1371
    %v1373 = vadd.f32 %v1369, %v1372
    %vm1374 = vweird.f32 %v813
    %vm1375 = vweird.f32 %v1369
    %vm1376 = vmor %vm1374, %vm1375
    %v1377 = vsel %vm1376, %v1369, %v1373
    %v1378 = vand.u32 2147483647, %v813
    %vm1379 = vcmp.eq.f32.partialorder %v1378, 8.507059e+37
    %v1380 = vand.u32 %v813, 2147483648
    %v1381 = vor.u32 1.1754944e-38, %v1380
    %v1382 = vsel %vm1379, %v1381, %v1377
    %v1383 = vmul.f32 1.0, %v1382
    %v1384 = vld [vmem:[%s5] sm:$0xf]
    %v1385 = vld [vmem:[%s5 + $0x4] sm:$0xf]
    %v1386 = vld [vmem:[%s5 + $0x8] sm:$0xf]
    %v1387 = vld [vmem:[%s5 + $0xc] sm:$0xf]
    %v1388 = vld [vmem:[%s5 + $0x10] sm:$0xf]
    %v1389 = vld [vmem:[%s6] sm:$0x1]
    %v1391 = vperm.slane %v1389, 0
    %v1398 = vunpack.c.l.b16 %v1384
    %v1399 = vunpack.c.l.b16 %v1385
    %v1400 = vunpack.c.l.b16 %v1386
    %v1401 = vunpack.c.l.b16 %v1387
    %v1402 = vunpack.c.l.b16 %v1388
    %v1403 = vpack.c.b16 %v1399, %v1398
    %v1404 = vpack.c.b16 %v1401, %v1400
    %v1405 = vpack.c.b16 %v1402, %v1402
    %v1409 = vsel %vm267, %v1405, 0
    %1411 = vmatpush.bf16.msra.mxu0 0
    %1412 = vmatpush.bf16.msra.mxu0 0
    %1413 = vmatpush.bf16.msra.mxu0 0
    %1414 = vmatpush.bf16.msra.mxu0 0
    %1415 = vmatpush.bf16.msra.mxu0 0
    %1416 = vmatpush.bf16.msra.mxu0 %v1409
    %1417 = vmatpush.bf16.msra.mxu0 %v1404
    %1418 = vmatpush.bf16.msra.mxu0 %v1403
    %1419 = vmatmul.bf16.gmra.mxu0 %v499
    %v1420 = vpop.f32.mrf.mxu0
    %v1421 = vadd.f32 %v1391, %v1420
    %v1422 = vpop.f32.mrf.mxu0
    %v1423 = vadd.f32 %v1391, %v1422
    %1424 = vmatmul.bf16.gmra.mxu0 %v502
    %v1425 = vpop.f32.mrf.mxu0
    %v1426 = vadd.f32 %v1391, %v1425
    %v1427 = vpop.f32.mrf.mxu0
    %v1428 = vadd.f32 %v1391, %v1427
    %1429 = vmatmul.bf16.gmra.mxu0 %v505
    %v1430 = vpop.f32.mrf.mxu0
    %v1431 = vadd.f32 %v1391, %v1430
    %v1432 = vpop.f32.mrf.mxu0
    %v1433 = vadd.f32 %v1391, %v1432
    %1434 = vmatmul.bf16.gmra.mxu0 %v508
    %v1435 = vpop.f32.mrf.mxu0
    %v1436 = vadd.f32 %v1391, %v1435
    %v1437 = vpop.f32.mrf.mxu0
    %v1438 = vadd.f32 %v1391, %v1437
    %1439 = vmatmul.bf16.gmra.mxu0 %v511
    %v1440 = vpop.f32.mrf.mxu0
    %v1441 = vadd.f32 %v1391, %v1440
    %v1442 = vpop.f32.mrf.mxu0
    %v1443 = vadd.f32 %v1391, %v1442
    %1444 = vmatmul.bf16.gmra.mxu0 %v514
    %v1445 = vpop.f32.mrf.mxu0
    %v1446 = vadd.f32 %v1391, %v1445
    %v1447 = vpop.f32.mrf.mxu0
    %v1448 = vadd.f32 %v1391, %v1447
    %1449 = vmatmul.bf16.gmra.mxu0 %v517
    %v1450 = vpop.f32.mrf.mxu0
    %v1451 = vadd.f32 %v1391, %v1450
    %v1452 = vpop.f32.mrf.mxu0
    %v1453 = vadd.f32 %v1391, %v1452
    %1454 = vmatmul.bf16.gmra.mxu0 %v520
    %v1455 = vpop.f32.mrf.mxu0
    %v1456 = vadd.f32 %v1391, %v1455
    %v1457 = vpop.f32.mrf.mxu0
    %v1458 = vadd.f32 %v1391, %v1457
    %1459 = vmatmul.bf16.gmra.mxu0 %v523
    %v1460 = vpop.f32.mrf.mxu0
    %v1461 = vadd.f32 %v1391, %v1460
    %v1462 = vpop.f32.mrf.mxu0
    %v1463 = vadd.f32 %v1391, %v1462
    %1464 = vmatmul.bf16.gmra.mxu0 %v526
    %v1465 = vpop.f32.mrf.mxu0
    %v1466 = vadd.f32 %v1391, %v1465
    %v1467 = vpop.f32.mrf.mxu0
    %v1468 = vadd.f32 %v1391, %v1467
    %1469 = vmatmul.bf16.gmra.mxu0 %v529
    %v1470 = vpop.f32.mrf.mxu0
    %v1471 = vadd.f32 %v1391, %v1470
    %v1472 = vpop.f32.mrf.mxu0
    %v1473 = vadd.f32 %v1391, %v1472
    %1474 = vmatmul.bf16.gmra.mxu0 %v532
    %v1475 = vpop.f32.mrf.mxu0
    %v1476 = vadd.f32 %v1391, %v1475
    %v1477 = vpop.f32.mrf.mxu0
    %v1478 = vadd.f32 %v1391, %v1477
    %1479 = vmatmul.bf16.gmra.mxu0 %v535
    %v1480 = vpop.f32.mrf.mxu0
    %v1481 = vadd.f32 %v1391, %v1480
    %v1482 = vpop.f32.mrf.mxu0
    %v1483 = vadd.f32 %v1391, %v1482
    %1484 = vmatmul.bf16.gmra.mxu0 %v538
    %v1485 = vpop.f32.mrf.mxu0
    %v1486 = vadd.f32 %v1391, %v1485
    %v1487 = vpop.f32.mrf.mxu0
    %v1488 = vadd.f32 %v1391, %v1487
    %1489 = vmatmul.bf16.gmra.mxu0 %v541
    %v1490 = vpop.f32.mrf.mxu0
    %v1491 = vadd.f32 %v1391, %v1490
    %v1492 = vpop.f32.mrf.mxu0
    %v1493 = vadd.f32 %v1391, %v1492
    %1494 = vmatmul.bf16.gmra.mxu0 %v544
    %v1495 = vpop.f32.mrf.mxu0
    %v1496 = vadd.f32 %v1391, %v1495
    %v1497 = vpop.f32.mrf.mxu0
    %v1498 = vadd.f32 %v1391, %v1497
    %1499 = vmatmul.bf16.gmra.mxu0 %v547
    %v1500 = vpop.f32.mrf.mxu0
    %v1501 = vadd.f32 %v1391, %v1500
    %v1502 = vpop.f32.mrf.mxu0
    %v1503 = vadd.f32 %v1391, %v1502
    %1504 = vmatmul.bf16.gmra.mxu0 %v550
    %v1505 = vpop.f32.mrf.mxu0
    %v1506 = vadd.f32 %v1391, %v1505
    %v1507 = vpop.f32.mrf.mxu0
    %v1508 = vadd.f32 %v1391, %v1507
    %1509 = vmatmul.bf16.gmra.mxu0 %v553
    %v1510 = vpop.f32.mrf.mxu0
    %v1511 = vadd.f32 %v1391, %v1510
    %v1512 = vpop.f32.mrf.mxu0
    %v1513 = vadd.f32 %v1391, %v1512
    %1514 = vdwg.mxu0
    %v1515 = vmax.f32 %v1421, 0.0
    %v1516 = vmax.f32 %v1423, 0.0
    %v1517 = vmax.f32 %v1426, 0.0
    %v1518 = vmax.f32 %v1428, 0.0
    %v1519 = vmax.f32 %v1431, 0.0
    %v1520 = vmax.f32 %v1433, 0.0
    %v1521 = vmax.f32 %v1436, 0.0
    %v1522 = vmax.f32 %v1438, 0.0
    %v1523 = vmax.f32 %v1441, 0.0
    %v1524 = vmax.f32 %v1443, 0.0
    %v1525 = vmax.f32 %v1446, 0.0
    %v1526 = vmax.f32 %v1448, 0.0
    %v1527 = vmax.f32 %v1451, 0.0
    %v1528 = vmax.f32 %v1453, 0.0
    %v1529 = vmax.f32 %v1456, 0.0
    %v1530 = vmax.f32 %v1458, 0.0
    %v1531 = vmax.f32 %v1461, 0.0
    %v1532 = vmax.f32 %v1463, 0.0
    %v1533 = vmax.f32 %v1466, 0.0
    %v1534 = vmax.f32 %v1468, 0.0
    %v1535 = vmax.f32 %v1471, 0.0
    %v1536 = vmax.f32 %v1473, 0.0
    %v1537 = vmax.f32 %v1476, 0.0
    %v1538 = vmax.f32 %v1478, 0.0
    %v1539 = vmax.f32 %v1481, 0.0
    %v1540 = vmax.f32 %v1483, 0.0
    %v1541 = vmax.f32 %v1486, 0.0
    %v1542 = vmax.f32 %v1488, 0.0
    %v1543 = vmax.f32 %v1491, 0.0
    %v1544 = vmax.f32 %v1493, 0.0
    %v1545 = vmax.f32 %v1496, 0.0
    %v1546 = vmax.f32 %v1498, 0.0
    %v1547 = vmax.f32 %v1501, 0.0
    %v1548 = vmax.f32 %v1503, 0.0
    %v1549 = vmax.f32 %v1506, 0.0
    %v1550 = vmax.f32 %v1508, 0.0
    %v1551 = vmax.f32 %v1511, 0.0
    %v1552 = vmax.f32 %v1513, 0.0
    %v1553 = vld [vmem:[%s7] sm:$0x1]
    %v1555 = vperm.slane %v1553, 0
    %v1557 = vmul.f32 %v1515, %v1555
    %v1558 = vmul.f32 %v1516, %v1555
    %v1559 = vmul.f32 %v1517, %v1555
    %v1560 = vmul.f32 %v1518, %v1555
    %v1561 = vmul.f32 %v1519, %v1555
    %v1562 = vmul.f32 %v1520, %v1555
    %v1563 = vmul.f32 %v1521, %v1555
    %v1564 = vmul.f32 %v1522, %v1555
    %v1565 = vmul.f32 %v1523, %v1555
    %v1566 = vmul.f32 %v1524, %v1555
    %v1567 = vmul.f32 %v1525, %v1555
    %v1568 = vmul.f32 %v1526, %v1555
    %v1569 = vmul.f32 %v1527, %v1555
    %v1570 = vmul.f32 %v1528, %v1555
    %v1571 = vmul.f32 %v1529, %v1555
    %v1572 = vmul.f32 %v1530, %v1555
    %v1573 = vmul.f32 %v1531, %v1555
    %v1574 = vmul.f32 %v1532, %v1555
    %v1575 = vmul.f32 %v1533, %v1555
    %v1576 = vmul.f32 %v1534, %v1555
    %v1577 = vmul.f32 %v1535, %v1555
    %v1578 = vmul.f32 %v1536, %v1555
    %v1579 = vmul.f32 %v1537, %v1555
    %v1580 = vmul.f32 %v1538, %v1555
    %v1581 = vmul.f32 %v1539, %v1555
    %v1582 = vmul.f32 %v1540, %v1555
    %v1583 = vmul.f32 %v1541, %v1555
    %v1584 = vmul.f32 %v1542, %v1555
    %v1585 = vmul.f32 %v1543, %v1555
    %v1586 = vmul.f32 %v1544, %v1555
    %v1587 = vmul.f32 %v1545, %v1555
    %v1588 = vmul.f32 %v1546, %v1555
    %v1589 = vmul.f32 %v1547, %v1555
    %v1590 = vmul.f32 %v1548, %v1555
    %v1591 = vmul.f32 %v1549, %v1555
    %v1592 = vmul.f32 %v1550, %v1555
    %v1593 = vmul.f32 %v1551, %v1555
    %v1594 = vmul.f32 %v1552, %v1555
    %1595 = vadd.xlane.f32.xlu0 %v1557
    %v1596 = vpop.xlane.xlu0 %1595
    %1597 = vadd.xlane.f32.xlu0 %v1558
    %v1598 = vpop.xlane.xlu0 %1597
    %1599 = vadd.xlane.f32.xlu0 %v1559
    %v1600 = vpop.xlane.xlu0 %1599
    %1601 = vadd.xlane.f32.xlu0 %v1560
    %v1602 = vpop.xlane.xlu0 %1601
    %1603 = vadd.xlane.f32.xlu0 %v1561
    %v1604 = vpop.xlane.xlu0 %1603
    %1605 = vadd.xlane.f32.xlu0 %v1562
    %v1606 = vpop.xlane.xlu0 %1605
    %1607 = vadd.xlane.f32.xlu0 %v1563
    %v1608 = vpop.xlane.xlu0 %1607
    %1609 = vadd.xlane.f32.xlu0 %v1564
    %v1610 = vpop.xlane.xlu0 %1609
    %1611 = vadd.xlane.f32.xlu0 %v1565
    %v1612 = vpop.xlane.xlu0 %1611
    %1613 = vadd.xlane.f32.xlu0 %v1566
    %v1614 = vpop.xlane.xlu0 %1613
    %1615 = vadd.xlane.f32.xlu0 %v1567
    %v1616 = vpop.xlane.xlu0 %1615
    %1617 = vadd.xlane.f32.xlu0 %v1568
    %v1618 = vpop.xlane.xlu0 %1617
    %1619 = vadd.xlane.f32.xlu0 %v1569
    %v1620 = vpop.xlane.xlu0 %1619
    %1621 = vadd.xlane.f32.xlu0 %v1570
    %v1622 = vpop.xlane.xlu0 %1621
    %1623 = vadd.xlane.f32.xlu0 %v1571
    %v1624 = vpop.xlane.xlu0 %1623
    %1625 = vadd.xlane.f32.xlu0 %v1572
    %v1626 = vpop.xlane.xlu0 %1625
    %1627 = vadd.xlane.f32.xlu0 %v1573
    %v1628 = vpop.xlane.xlu0 %1627
    %1629 = vadd.xlane.f32.xlu0 %v1574
    %v1630 = vpop.xlane.xlu0 %1629
    %1631 = vadd.xlane.f32.xlu0 %v1575
    %v1632 = vpop.xlane.xlu0 %1631
    %1633 = vadd.xlane.f32.xlu0 %v1576
    %v1634 = vpop.xlane.xlu0 %1633
    %1635 = vadd.xlane.f32.xlu0 %v1577
    %v1636 = vpop.xlane.xlu0 %1635
    %1637 = vadd.xlane.f32.xlu0 %v1578
    %v1638 = vpop.xlane.xlu0 %1637
    %1639 = vadd.xlane.f32.xlu0 %v1579
    %v1640 = vpop.xlane.xlu0 %1639
    %1641 = vadd.xlane.f32.xlu0 %v1580
    %v1642 = vpop.xlane.xlu0 %1641
    %1643 = vadd.xlane.f32.xlu0 %v1581
    %v1644 = vpop.xlane.xlu0 %1643
    %1645 = vadd.xlane.f32.xlu0 %v1582
    %v1646 = vpop.xlane.xlu0 %1645
    %1647 = vadd.xlane.f32.xlu0 %v1583
    %v1648 = vpop.xlane.xlu0 %1647
    %1649 = vadd.xlane.f32.xlu0 %v1584
    %v1650 = vpop.xlane.xlu0 %1649
    %1651 = vadd.xlane.f32.xlu0 %v1585
    %v1652 = vpop.xlane.xlu0 %1651
    %1653 = vadd.xlane.f32.xlu0 %v1586
    %v1654 = vpop.xlane.xlu0 %1653
    %1655 = vadd.xlane.f32.xlu0 %v1587
    %v1656 = vpop.xlane.xlu0 %1655
    %1657 = vadd.xlane.f32.xlu0 %v1588
    %v1658 = vpop.xlane.xlu0 %1657
    %1659 = vadd.xlane.f32.xlu0 %v1589
    %v1660 = vpop.xlane.xlu0 %1659
    %1661 = vadd.xlane.f32.xlu0 %v1590
    %v1662 = vpop.xlane.xlu0 %1661
    %1663 = vadd.xlane.f32.xlu0 %v1591
    %v1664 = vpop.xlane.xlu0 %1663
    %1665 = vadd.xlane.f32.xlu0 %v1592
    %v1666 = vpop.xlane.xlu0 %1665
    %1667 = vadd.xlane.f32.xlu0 %v1593
    %v1668 = vpop.xlane.xlu0 %1667
    %1669 = vadd.xlane.f32.xlu0 %v1594
    %v1670 = vpop.xlane.xlu0 %1669
    %v1671 = vld [vmem:[#allocation2] sm:$0x1]
    %v1673 = vperm.slane %v1671, 0
    %v1675 = vadd.f32 %v1596, %v1673
    %v1676 = vadd.f32 %v1598, %v1673
    %v1677 = vadd.f32 %v1600, %v1673
    %v1678 = vadd.f32 %v1602, %v1673
    %v1679 = vadd.f32 %v1604, %v1673
    %v1680 = vadd.f32 %v1606, %v1673
    %v1681 = vadd.f32 %v1608, %v1673
    %v1682 = vadd.f32 %v1610, %v1673
    %v1683 = vadd.f32 %v1612, %v1673
    %v1684 = vadd.f32 %v1614, %v1673
    %v1685 = vadd.f32 %v1616, %v1673
    %v1686 = vadd.f32 %v1618, %v1673
    %v1687 = vadd.f32 %v1620, %v1673
    %v1688 = vadd.f32 %v1622, %v1673
    %v1689 = vadd.f32 %v1624, %v1673
    %v1690 = vadd.f32 %v1626, %v1673
    %v1691 = vadd.f32 %v1628, %v1673
    %v1692 = vadd.f32 %v1630, %v1673
    %v1693 = vadd.f32 %v1632, %v1673
    %v1694 = vadd.f32 %v1634, %v1673
    %v1695 = vadd.f32 %v1636, %v1673
    %v1696 = vadd.f32 %v1638, %v1673
    %v1697 = vadd.f32 %v1640, %v1673
    %v1698 = vadd.f32 %v1642, %v1673
    %v1699 = vadd.f32 %v1644, %v1673
    %v1700 = vadd.f32 %v1646, %v1673
    %v1701 = vadd.f32 %v1648, %v1673
    %v1702 = vadd.f32 %v1650, %v1673
    %v1703 = vadd.f32 %v1652, %v1673
    %v1704 = vadd.f32 %v1654, %v1673
    %v1705 = vadd.f32 %v1656, %v1673
    %v1706 = vadd.f32 %v1658, %v1673
    %v1707 = vadd.f32 %v1660, %v1673
    %v1708 = vadd.f32 %v1662, %v1673
    %v1709 = vadd.f32 %v1664, %v1673
    %v1710 = vadd.f32 %v1666, %v1673
    %v1711 = vadd.f32 %v1668, %v1673
    %v1712 = vadd.f32 %v1670, %v1673
    %v1713 = vxor.u32 %v1675, 2147483648
    %v1714 = vxor.u32 %v1676, 2147483648
    %v1715 = vxor.u32 %v1677, 2147483648
    %v1716 = vxor.u32 %v1678, 2147483648
    %v1717 = vxor.u32 %v1679, 2147483648
    %v1718 = vxor.u32 %v1680, 2147483648
    %v1719 = vxor.u32 %v1681, 2147483648
    %v1720 = vxor.u32 %v1682, 2147483648
    %v1721 = vxor.u32 %v1683, 2147483648
    %v1722 = vxor.u32 %v1684, 2147483648
    %v1723 = vxor.u32 %v1685, 2147483648
    %v1724 = vxor.u32 %v1686, 2147483648
    %v1725 = vxor.u32 %v1687, 2147483648
    %v1726 = vxor.u32 %v1688, 2147483648
    %v1727 = vxor.u32 %v1689, 2147483648
    %v1728 = vxor.u32 %v1690, 2147483648
    %v1729 = vxor.u32 %v1691, 2147483648
    %v1730 = vxor.u32 %v1692, 2147483648
    %v1731 = vxor.u32 %v1693, 2147483648
    %v1732 = vxor.u32 %v1694, 2147483648
    %v1733 = vxor.u32 %v1695, 2147483648
    %v1734 = vxor.u32 %v1696, 2147483648
    %v1735 = vxor.u32 %v1697, 2147483648
    %v1736 = vxor.u32 %v1698, 2147483648
    %v1737 = vxor.u32 %v1699, 2147483648
    %v1738 = vxor.u32 %v1700, 2147483648
    %v1739 = vxor.u32 %v1701, 2147483648
    %v1740 = vxor.u32 %v1702, 2147483648
    %v1741 = vxor.u32 %v1703, 2147483648
    %v1742 = vxor.u32 %v1704, 2147483648
    %v1743 = vxor.u32 %v1705, 2147483648
    %v1744 = vxor.u32 %v1706, 2147483648
    %v1745 = vxor.u32 %v1707, 2147483648
    %v1746 = vxor.u32 %v1708, 2147483648
    %v1747 = vxor.u32 %v1709, 2147483648
    %v1748 = vxor.u32 %v1710, 2147483648
    %v1749 = vxor.u32 %v1711, 2147483648
    %v1750 = vxor.u32 %v1712, 2147483648
    %v1751 = vmul.f32 %v1713, 1.442695
    %v1752 = vpow.pop %v1751
    %v1753 = vmul.f32 %v1714, 1.442695
    %v1754 = vpow.pop %v1753
    %v1755 = vmul.f32 %v1715, 1.442695
    %v1756 = vpow.pop %v1755
    %v1757 = vmul.f32 %v1716, 1.442695
    %v1758 = vpow.pop %v1757
    %v1759 = vmul.f32 %v1717, 1.442695
    %v1760 = vpow.pop %v1759
    %v1761 = vmul.f32 %v1718, 1.442695
    %v1762 = vpow.pop %v1761
    %v1763 = vmul.f32 %v1719, 1.442695
    %v1764 = vpow.pop %v1763
    %v1765 = vmul.f32 %v1720, 1.442695
    %v1766 = vpow.pop %v1765
    %v1767 = vmul.f32 %v1721, 1.442695
    %v1768 = vpow.pop %v1767
    %v1769 = vmul.f32 %v1722, 1.442695
    %v1770 = vpow.pop %v1769
    %v1771 = vmul.f32 %v1723, 1.442695
    %v1772 = vpow.pop %v1771
    %v1773 = vmul.f32 %v1724, 1.442695
    %v1774 = vpow.pop %v1773
    %v1775 = vmul.f32 %v1725, 1.442695
    %v1776 = vpow.pop %v1775
    %v1777 = vmul.f32 %v1726, 1.442695
    %v1778 = vpow.pop %v1777
    %v1779 = vmul.f32 %v1727, 1.442695
    %v1780 = vpow.pop %v1779
    %v1781 = vmul.f32 %v1728, 1.442695
    %v1782 = vpow.pop %v1781
    %v1783 = vmul.f32 %v1729, 1.442695
    %v1784 = vpow.pop %v1783
    %v1785 = vmul.f32 %v1730, 1.442695
    %v1786 = vpow.pop %v1785
    %v1787 = vmul.f32 %v1731, 1.442695
    %v1788 = vpow.pop %v1787
    %v1789 = vmul.f32 %v1732, 1.442695
    %v1790 = vpow.pop %v1789
    %v1791 = vmul.f32 %v1733, 1.442695
    %v1792 = vpow.pop %v1791
    %v1793 = vmul.f32 %v1734, 1.442695
    %v1794 = vpow.pop %v1793
    %v1795 = vmul.f32 %v1735, 1.442695
    %v1796 = vpow.pop %v1795
    %v1797 = vmul.f32 %v1736, 1.442695
    %v1798 = vpow.pop %v1797
    %v1799 = vmul.f32 %v1737, 1.442695
    %v1800 = vpow.pop %v1799
    %v1801 = vmul.f32 %v1738, 1.442695
    %v1802 = vpow.pop %v1801
    %v1803 = vmul.f32 %v1739, 1.442695
    %v1804 = vpow.pop %v1803
    %v1805 = vmul.f32 %v1740, 1.442695
    %v1806 = vpow.pop %v1805
    %v1807 = vmul.f32 %v1741, 1.442695
    %v1808 = vpow.pop %v1807
    %v1809 = vmul.f32 %v1742, 1.442695
    %v1810 = vpow.pop %v1809
    %v1811 = vmul.f32 %v1743, 1.442695
    %v1812 = vpow.pop %v1811
    %v1813 = vmul.f32 %v1744, 1.442695
    %v1814 = vpow.pop %v1813
    %v1815 = vmul.f32 %v1745, 1.442695
    %v1816 = vpow.pop %v1815
    %v1817 = vmul.f32 %v1746, 1.442695
    %v1818 = vpow.pop %v1817
    %v1819 = vmul.f32 %v1747, 1.442695
    %v1820 = vpow.pop %v1819
    %v1821 = vmul.f32 %v1748, 1.442695
    %v1822 = vpow.pop %v1821
    %v1823 = vmul.f32 %v1749, 1.442695
    %v1824 = vpow.pop %v1823
    %v1825 = vmul.f32 %v1750, 1.442695
    %v1826 = vpow.pop %v1825
    %v1827 = vadd.f32 %v1752, 1.0
    %v1828 = vadd.f32 %v1754, 1.0
    %v1829 = vadd.f32 %v1756, 1.0
    %v1830 = vadd.f32 %v1758, 1.0
    %v1831 = vadd.f32 %v1760, 1.0
    %v1832 = vadd.f32 %v1762, 1.0
    %v1833 = vadd.f32 %v1764, 1.0
    %v1834 = vadd.f32 %v1766, 1.0
    %v1835 = vadd.f32 %v1768, 1.0
    %v1836 = vadd.f32 %v1770, 1.0
    %v1837 = vadd.f32 %v1772, 1.0
    %v1838 = vadd.f32 %v1774, 1.0
    %v1839 = vadd.f32 %v1776, 1.0
    %v1840 = vadd.f32 %v1778, 1.0
    %v1841 = vadd.f32 %v1780, 1.0
    %v1842 = vadd.f32 %v1782, 1.0
    %v1843 = vadd.f32 %v1784, 1.0
    %v1844 = vadd.f32 %v1786, 1.0
    %v1845 = vadd.f32 %v1788, 1.0
    %v1846 = vadd.f32 %v1790, 1.0
    %v1847 = vadd.f32 %v1792, 1.0
    %v1848 = vadd.f32 %v1794, 1.0
    %v1849 = vadd.f32 %v1796, 1.0
    %v1850 = vadd.f32 %v1798, 1.0
    %v1851 = vadd.f32 %v1800, 1.0
    %v1852 = vadd.f32 %v1802, 1.0
    %v1853 = vadd.f32 %v1804, 1.0
    %v1854 = vadd.f32 %v1806, 1.0
    %v1855 = vadd.f32 %v1808, 1.0
    %v1856 = vadd.f32 %v1810, 1.0
    %v1857 = vadd.f32 %v1812, 1.0
    %v1858 = vadd.f32 %v1814, 1.0
    %v1859 = vadd.f32 %v1816, 1.0
    %v1860 = vadd.f32 %v1818, 1.0
    %v1861 = vadd.f32 %v1820, 1.0
    %v1862 = vadd.f32 %v1822, 1.0
    %v1863 = vadd.f32 %v1824, 1.0
    %v1864 = vadd.f32 %v1826, 1.0
    %v1865 = vrcp.pop %v1827
    %v1866 = vmul.f32 %v1827, %v1865
    %v1867 = vsub.f32 1.0, %v1866
    %v1868 = vmul.f32 %v1865, %v1867
    %v1869 = vadd.f32 %v1865, %v1868
    %vm1870 = vweird.f32 %v1827
    %vm1871 = vweird.f32 %v1865
    %vm1872 = vmor %vm1870, %vm1871
    %v1873 = vsel %vm1872, %v1865, %v1869
    %v1874 = vand.u32 2147483647, %v1827
    %vm1875 = vcmp.eq.f32.partialorder %v1874, 8.507059e+37
    %v1876 = vand.u32 %v1827, 2147483648
    %v1877 = vor.u32 1.1754944e-38, %v1876
    %v1878 = vsel %vm1875, %v1877, %v1873
    %v1879 = vmul.f32 1.0, %v1878
    %v1880 = vrcp.pop %v1828
    %v1881 = vmul.f32 %v1828, %v1880
    %v1882 = vsub.f32 1.0, %v1881
    %v1883 = vmul.f32 %v1880, %v1882
    %v1884 = vadd.f32 %v1880, %v1883
    %vm1885 = vweird.f32 %v1828
    %vm1886 = vweird.f32 %v1880
    %vm1887 = vmor %vm1885, %vm1886
    %v1888 = vsel %vm1887, %v1880, %v1884
    %v1889 = vand.u32 2147483647, %v1828
    %vm1890 = vcmp.eq.f32.partialorder %v1889, 8.507059e+37
    %v1891 = vand.u32 %v1828, 2147483648
    %v1892 = vor.u32 1.1754944e-38, %v1891
    %v1893 = vsel %vm1890, %v1892, %v1888
    %v1894 = vmul.f32 1.0, %v1893
    %v1895 = vrcp.pop %v1829
    %v1896 = vmul.f32 %v1829, %v1895
    %v1897 = vsub.f32 1.0, %v1896
    %v1898 = vmul.f32 %v1895, %v1897
    %v1899 = vadd.f32 %v1895, %v1898
    %vm1900 = vweird.f32 %v1829
    %vm1901 = vweird.f32 %v1895
    %vm1902 = vmor %vm1900, %vm1901
    %v1903 = vsel %vm1902, %v1895, %v1899
    %v1904 = vand.u32 2147483647, %v1829
    %vm1905 = vcmp.eq.f32.partialorder %v1904, 8.507059e+37
    %v1906 = vand.u32 %v1829, 2147483648
    %v1907 = vor.u32 1.1754944e-38, %v1906
    %v1908 = vsel %vm1905, %v1907, %v1903
    %v1909 = vmul.f32 1.0, %v1908
    %v1910 = vrcp.pop %v1830
    %v1911 = vmul.f32 %v1830, %v1910
    %v1912 = vsub.f32 1.0, %v1911
    %v1913 = vmul.f32 %v1910, %v1912
    %v1914 = vadd.f32 %v1910, %v1913
    %vm1915 = vweird.f32 %v1830
    %vm1916 = vweird.f32 %v1910
    %vm1917 = vmor %vm1915, %vm1916
    %v1918 = vsel %vm1917, %v1910, %v1914
    %v1919 = vand.u32 2147483647, %v1830
    %vm1920 = vcmp.eq.f32.partialorder %v1919, 8.507059e+37
    %v1921 = vand.u32 %v1830, 2147483648
    %v1922 = vor.u32 1.1754944e-38, %v1921
    %v1923 = vsel %vm1920, %v1922, %v1918
    %v1924 = vmul.f32 1.0, %v1923
    %v1925 = vrcp.pop %v1831
    %v1926 = vmul.f32 %v1831, %v1925
    %v1927 = vsub.f32 1.0, %v1926
    %v1928 = vmul.f32 %v1925, %v1927
    %v1929 = vadd.f32 %v1925, %v1928
    %vm1930 = vweird.f32 %v1831
    %vm1931 = vweird.f32 %v1925
    %vm1932 = vmor %vm1930, %vm1931
    %v1933 = vsel %vm1932, %v1925, %v1929
    %v1934 = vand.u32 2147483647, %v1831
    %vm1935 = vcmp.eq.f32.partialorder %v1934, 8.507059e+37
    %v1936 = vand.u32 %v1831, 2147483648
    %v1937 = vor.u32 1.1754944e-38, %v1936
    %v1938 = vsel %vm1935, %v1937, %v1933
    %v1939 = vmul.f32 1.0, %v1938
    %v1940 = vrcp.pop %v1832
    %v1941 = vmul.f32 %v1832, %v1940
    %v1942 = vsub.f32 1.0, %v1941
    %v1943 = vmul.f32 %v1940, %v1942
    %v1944 = vadd.f32 %v1940, %v1943
    %vm1945 = vweird.f32 %v1832
    %vm1946 = vweird.f32 %v1940
    %vm1947 = vmor %vm1945, %vm1946
    %v1948 = vsel %vm1947, %v1940, %v1944
    %v1949 = vand.u32 2147483647, %v1832
    %vm1950 = vcmp.eq.f32.partialorder %v1949, 8.507059e+37
    %v1951 = vand.u32 %v1832, 2147483648
    %v1952 = vor.u32 1.1754944e-38, %v1951
    %v1953 = vsel %vm1950, %v1952, %v1948
    %v1954 = vmul.f32 1.0, %v1953
    %v1955 = vrcp.pop %v1833
    %v1956 = vmul.f32 %v1833, %v1955
    %v1957 = vsub.f32 1.0, %v1956
    %v1958 = vmul.f32 %v1955, %v1957
    %v1959 = vadd.f32 %v1955, %v1958
    %vm1960 = vweird.f32 %v1833
    %vm1961 = vweird.f32 %v1955
    %vm1962 = vmor %vm1960, %vm1961
    %v1963 = vsel %vm1962, %v1955, %v1959
    %v1964 = vand.u32 2147483647, %v1833
    %vm1965 = vcmp.eq.f32.partialorder %v1964, 8.507059e+37
    %v1966 = vand.u32 %v1833, 2147483648
    %v1967 = vor.u32 1.1754944e-38, %v1966
    %v1968 = vsel %vm1965, %v1967, %v1963
    %v1969 = vmul.f32 1.0, %v1968
    %v1970 = vrcp.pop %v1834
    %v1971 = vmul.f32 %v1834, %v1970
    %v1972 = vsub.f32 1.0, %v1971
    %v1973 = vmul.f32 %v1970, %v1972
    %v1974 = vadd.f32 %v1970, %v1973
    %vm1975 = vweird.f32 %v1834
    %vm1976 = vweird.f32 %v1970
    %vm1977 = vmor %vm1975, %vm1976
    %v1978 = vsel %vm1977, %v1970, %v1974
    %v1979 = vand.u32 2147483647, %v1834
    %vm1980 = vcmp.eq.f32.partialorder %v1979, 8.507059e+37
    %v1981 = vand.u32 %v1834, 2147483648
    %v1982 = vor.u32 1.1754944e-38, %v1981
    %v1983 = vsel %vm1980, %v1982, %v1978
    %v1984 = vmul.f32 1.0, %v1983
    %v1985 = vrcp.pop %v1835
    %v1986 = vmul.f32 %v1835, %v1985
    %v1987 = vsub.f32 1.0, %v1986
    %v1988 = vmul.f32 %v1985, %v1987
    %v1989 = vadd.f32 %v1985, %v1988
    %vm1990 = vweird.f32 %v1835
    %vm1991 = vweird.f32 %v1985
    %vm1992 = vmor %vm1990, %vm1991
    %v1993 = vsel %vm1992, %v1985, %v1989
    %v1994 = vand.u32 2147483647, %v1835
    %vm1995 = vcmp.eq.f32.partialorder %v1994, 8.507059e+37
    %v1996 = vand.u32 %v1835, 2147483648
    %v1997 = vor.u32 1.1754944e-38, %v1996
    %v1998 = vsel %vm1995, %v1997, %v1993
    %v1999 = vmul.f32 1.0, %v1998
    %v2000 = vrcp.pop %v1836
    %v2001 = vmul.f32 %v1836, %v2000
    %v2002 = vsub.f32 1.0, %v2001
    %v2003 = vmul.f32 %v2000, %v2002
    %v2004 = vadd.f32 %v2000, %v2003
    %vm2005 = vweird.f32 %v1836
    %vm2006 = vweird.f32 %v2000
    %vm2007 = vmor %vm2005, %vm2006
    %v2008 = vsel %vm2007, %v2000, %v2004
    %v2009 = vand.u32 2147483647, %v1836
    %vm2010 = vcmp.eq.f32.partialorder %v2009, 8.507059e+37
    %v2011 = vand.u32 %v1836, 2147483648
    %v2012 = vor.u32 1.1754944e-38, %v2011
    %v2013 = vsel %vm2010, %v2012, %v2008
    %v2014 = vmul.f32 1.0, %v2013
    %v2015 = vrcp.pop %v1837
    %v2016 = vmul.f32 %v1837, %v2015
    %v2017 = vsub.f32 1.0, %v2016
    %v2018 = vmul.f32 %v2015, %v2017
    %v2019 = vadd.f32 %v2015, %v2018
    %vm2020 = vweird.f32 %v1837
    %vm2021 = vweird.f32 %v2015
    %vm2022 = vmor %vm2020, %vm2021
    %v2023 = vsel %vm2022, %v2015, %v2019
    %v2024 = vand.u32 2147483647, %v1837
    %vm2025 = vcmp.eq.f32.partialorder %v2024, 8.507059e+37
    %v2026 = vand.u32 %v1837, 2147483648
    %v2027 = vor.u32 1.1754944e-38, %v2026
    %v2028 = vsel %vm2025, %v2027, %v2023
    %v2029 = vmul.f32 1.0, %v2028
    %v2030 = vrcp.pop %v1838
    %v2031 = vmul.f32 %v1838, %v2030
    %v2032 = vsub.f32 1.0, %v2031
    %v2033 = vmul.f32 %v2030, %v2032
    %v2034 = vadd.f32 %v2030, %v2033
    %vm2035 = vweird.f32 %v1838
    %vm2036 = vweird.f32 %v2030
    %vm2037 = vmor %vm2035, %vm2036
    %v2038 = vsel %vm2037, %v2030, %v2034
    %v2039 = vand.u32 2147483647, %v1838
    %vm2040 = vcmp.eq.f32.partialorder %v2039, 8.507059e+37
    %v2041 = vand.u32 %v1838, 2147483648
    %v2042 = vor.u32 1.1754944e-38, %v2041
    %v2043 = vsel %vm2040, %v2042, %v2038
    %v2044 = vmul.f32 1.0, %v2043
    %v2045 = vrcp.pop %v1839
    %v2046 = vmul.f32 %v1839, %v2045
    %v2047 = vsub.f32 1.0, %v2046
    %v2048 = vmul.f32 %v2045, %v2047
    %v2049 = vadd.f32 %v2045, %v2048
    %vm2050 = vweird.f32 %v1839
    %vm2051 = vweird.f32 %v2045
    %vm2052 = vmor %vm2050, %vm2051
    %v2053 = vsel %vm2052, %v2045, %v2049
    %v2054 = vand.u32 2147483647, %v1839
    %vm2055 = vcmp.eq.f32.partialorder %v2054, 8.507059e+37
    %v2056 = vand.u32 %v1839, 2147483648
    %v2057 = vor.u32 1.1754944e-38, %v2056
    %v2058 = vsel %vm2055, %v2057, %v2053
    %v2059 = vmul.f32 1.0, %v2058
    %v2060 = vrcp.pop %v1840
    %v2061 = vmul.f32 %v1840, %v2060
    %v2062 = vsub.f32 1.0, %v2061
    %v2063 = vmul.f32 %v2060, %v2062
    %v2064 = vadd.f32 %v2060, %v2063
    %vm2065 = vweird.f32 %v1840
    %vm2066 = vweird.f32 %v2060
    %vm2067 = vmor %vm2065, %vm2066
    %v2068 = vsel %vm2067, %v2060, %v2064
    %v2069 = vand.u32 2147483647, %v1840
    %vm2070 = vcmp.eq.f32.partialorder %v2069, 8.507059e+37
    %v2071 = vand.u32 %v1840, 2147483648
    %v2072 = vor.u32 1.1754944e-38, %v2071
    %v2073 = vsel %vm2070, %v2072, %v2068
    %v2074 = vmul.f32 1.0, %v2073
    %v2075 = vrcp.pop %v1841
    %v2076 = vmul.f32 %v1841, %v2075
    %v2077 = vsub.f32 1.0, %v2076
    %v2078 = vmul.f32 %v2075, %v2077
    %v2079 = vadd.f32 %v2075, %v2078
    %vm2080 = vweird.f32 %v1841
    %vm2081 = vweird.f32 %v2075
    %vm2082 = vmor %vm2080, %vm2081
    %v2083 = vsel %vm2082, %v2075, %v2079
    %v2084 = vand.u32 2147483647, %v1841
    %vm2085 = vcmp.eq.f32.partialorder %v2084, 8.507059e+37
    %v2086 = vand.u32 %v1841, 2147483648
    %v2087 = vor.u32 1.1754944e-38, %v2086
    %v2088 = vsel %vm2085, %v2087, %v2083
    %v2089 = vmul.f32 1.0, %v2088
    %v2090 = vrcp.pop %v1842
    %v2091 = vmul.f32 %v1842, %v2090
    %v2092 = vsub.f32 1.0, %v2091
    %v2093 = vmul.f32 %v2090, %v2092
    %v2094 = vadd.f32 %v2090, %v2093
    %vm2095 = vweird.f32 %v1842
    %vm2096 = vweird.f32 %v2090
    %vm2097 = vmor %vm2095, %vm2096
    %v2098 = vsel %vm2097, %v2090, %v2094
    %v2099 = vand.u32 2147483647, %v1842
    %vm2100 = vcmp.eq.f32.partialorder %v2099, 8.507059e+37
    %v2101 = vand.u32 %v1842, 2147483648
    %v2102 = vor.u32 1.1754944e-38, %v2101
    %v2103 = vsel %vm2100, %v2102, %v2098
    %v2104 = vmul.f32 1.0, %v2103
    %v2105 = vrcp.pop %v1843
    %v2106 = vmul.f32 %v1843, %v2105
    %v2107 = vsub.f32 1.0, %v2106
    %v2108 = vmul.f32 %v2105, %v2107
    %v2109 = vadd.f32 %v2105, %v2108
    %vm2110 = vweird.f32 %v1843
    %vm2111 = vweird.f32 %v2105
    %vm2112 = vmor %vm2110, %vm2111
    %v2113 = vsel %vm2112, %v2105, %v2109
    %v2114 = vand.u32 2147483647, %v1843
    %vm2115 = vcmp.eq.f32.partialorder %v2114, 8.507059e+37
    %v2116 = vand.u32 %v1843, 2147483648
    %v2117 = vor.u32 1.1754944e-38, %v2116
    %v2118 = vsel %vm2115, %v2117, %v2113
    %v2119 = vmul.f32 1.0, %v2118
    %v2120 = vrcp.pop %v1844
    %v2121 = vmul.f32 %v1844, %v2120
    %v2122 = vsub.f32 1.0, %v2121
    %v2123 = vmul.f32 %v2120, %v2122
    %v2124 = vadd.f32 %v2120, %v2123
    %vm2125 = vweird.f32 %v1844
    %vm2126 = vweird.f32 %v2120
    %vm2127 = vmor %vm2125, %vm2126
    %v2128 = vsel %vm2127, %v2120, %v2124
    %v2129 = vand.u32 2147483647, %v1844
    %vm2130 = vcmp.eq.f32.partialorder %v2129, 8.507059e+37
    %v2131 = vand.u32 %v1844, 2147483648
    %v2132 = vor.u32 1.1754944e-38, %v2131
    %v2133 = vsel %vm2130, %v2132, %v2128
    %v2134 = vmul.f32 1.0, %v2133
    %v2135 = vrcp.pop %v1845
    %v2136 = vmul.f32 %v1845, %v2135
    %v2137 = vsub.f32 1.0, %v2136
    %v2138 = vmul.f32 %v2135, %v2137
    %v2139 = vadd.f32 %v2135, %v2138
    %vm2140 = vweird.f32 %v1845
    %vm2141 = vweird.f32 %v2135
    %vm2142 = vmor %vm2140, %vm2141
    %v2143 = vsel %vm2142, %v2135, %v2139
    %v2144 = vand.u32 2147483647, %v1845
    %vm2145 = vcmp.eq.f32.partialorder %v2144, 8.507059e+37
    %v2146 = vand.u32 %v1845, 2147483648
    %v2147 = vor.u32 1.1754944e-38, %v2146
    %v2148 = vsel %vm2145, %v2147, %v2143
    %v2149 = vmul.f32 1.0, %v2148
    %v2150 = vrcp.pop %v1846
    %v2151 = vmul.f32 %v1846, %v2150
    %v2152 = vsub.f32 1.0, %v2151
    %v2153 = vmul.f32 %v2150, %v2152
    %v2154 = vadd.f32 %v2150, %v2153
    %vm2155 = vweird.f32 %v1846
    %vm2156 = vweird.f32 %v2150
    %vm2157 = vmor %vm2155, %vm2156
    %v2158 = vsel %vm2157, %v2150, %v2154
    %v2159 = vand.u32 2147483647, %v1846
    %vm2160 = vcmp.eq.f32.partialorder %v2159, 8.507059e+37
    %v2161 = vand.u32 %v1846, 2147483648
    %v2162 = vor.u32 1.1754944e-38, %v2161
    %v2163 = vsel %vm2160, %v2162, %v2158
    %v2164 = vmul.f32 1.0, %v2163
    %v2165 = vrcp.pop %v1847
    %v2166 = vmul.f32 %v1847, %v2165
    %v2167 = vsub.f32 1.0, %v2166
    %v2168 = vmul.f32 %v2165, %v2167
    %v2169 = vadd.f32 %v2165, %v2168
    %vm2170 = vweird.f32 %v1847
    %vm2171 = vweird.f32 %v2165
    %vm2172 = vmor %vm2170, %vm2171
    %v2173 = vsel %vm2172, %v2165, %v2169
    %v2174 = vand.u32 2147483647, %v1847
    %vm2175 = vcmp.eq.f32.partialorder %v2174, 8.507059e+37
    %v2176 = vand.u32 %v1847, 2147483648
    %v2177 = vor.u32 1.1754944e-38, %v2176
    %v2178 = vsel %vm2175, %v2177, %v2173
    %v2179 = vmul.f32 1.0, %v2178
    %v2180 = vrcp.pop %v1848
    %v2181 = vmul.f32 %v1848, %v2180
    %v2182 = vsub.f32 1.0, %v2181
    %v2183 = vmul.f32 %v2180, %v2182
    %v2184 = vadd.f32 %v2180, %v2183
    %vm2185 = vweird.f32 %v1848
    %vm2186 = vweird.f32 %v2180
    %vm2187 = vmor %vm2185, %vm2186
    %v2188 = vsel %vm2187, %v2180, %v2184
    %v2189 = vand.u32 2147483647, %v1848
    %vm2190 = vcmp.eq.f32.partialorder %v2189, 8.507059e+37
    %v2191 = vand.u32 %v1848, 2147483648
    %v2192 = vor.u32 1.1754944e-38, %v2191
    %v2193 = vsel %vm2190, %v2192, %v2188
    %v2194 = vmul.f32 1.0, %v2193
    %v2195 = vrcp.pop %v1849
    %v2196 = vmul.f32 %v1849, %v2195
    %v2197 = vsub.f32 1.0, %v2196
    %v2198 = vmul.f32 %v2195, %v2197
    %v2199 = vadd.f32 %v2195, %v2198
    %vm2200 = vweird.f32 %v1849
    %vm2201 = vweird.f32 %v2195
    %vm2202 = vmor %vm2200, %vm2201
    %v2203 = vsel %vm2202, %v2195, %v2199
    %v2204 = vand.u32 2147483647, %v1849
    %vm2205 = vcmp.eq.f32.partialorder %v2204, 8.507059e+37
    %v2206 = vand.u32 %v1849, 2147483648
    %v2207 = vor.u32 1.1754944e-38, %v2206
    %v2208 = vsel %vm2205, %v2207, %v2203
    %v2209 = vmul.f32 1.0, %v2208
    %v2210 = vrcp.pop %v1850
    %v2211 = vmul.f32 %v1850, %v2210
    %v2212 = vsub.f32 1.0, %v2211
    %v2213 = vmul.f32 %v2210, %v2212
    %v2214 = vadd.f32 %v2210, %v2213
    %vm2215 = vweird.f32 %v1850
    %vm2216 = vweird.f32 %v2210
    %vm2217 = vmor %vm2215, %vm2216
    %v2218 = vsel %vm2217, %v2210, %v2214
    %v2219 = vand.u32 2147483647, %v1850
    %vm2220 = vcmp.eq.f32.partialorder %v2219, 8.507059e+37
    %v2221 = vand.u32 %v1850, 2147483648
    %v2222 = vor.u32 1.1754944e-38, %v2221
    %v2223 = vsel %vm2220, %v2222, %v2218
    %v2224 = vmul.f32 1.0, %v2223
    %v2225 = vrcp.pop %v1851
    %v2226 = vmul.f32 %v1851, %v2225
    %v2227 = vsub.f32 1.0, %v2226
    %v2228 = vmul.f32 %v2225, %v2227
    %v2229 = vadd.f32 %v2225, %v2228
    %vm2230 = vweird.f32 %v1851
    %vm2231 = vweird.f32 %v2225
    %vm2232 = vmor %vm2230, %vm2231
    %v2233 = vsel %vm2232, %v2225, %v2229
    %v2234 = vand.u32 2147483647, %v1851
    %vm2235 = vcmp.eq.f32.partialorder %v2234, 8.507059e+37
    %v2236 = vand.u32 %v1851, 2147483648
    %v2237 = vor.u32 1.1754944e-38, %v2236
    %v2238 = vsel %vm2235, %v2237, %v2233
    %v2239 = vmul.f32 1.0, %v2238
    %v2240 = vrcp.pop %v1852
    %v2241 = vmul.f32 %v1852, %v2240
    %v2242 = vsub.f32 1.0, %v2241
    %v2243 = vmul.f32 %v2240, %v2242
    %v2244 = vadd.f32 %v2240, %v2243
    %vm2245 = vweird.f32 %v1852
    %vm2246 = vweird.f32 %v2240
    %vm2247 = vmor %vm2245, %vm2246
    %v2248 = vsel %vm2247, %v2240, %v2244
    %v2249 = vand.u32 2147483647, %v1852
    %vm2250 = vcmp.eq.f32.partialorder %v2249, 8.507059e+37
    %v2251 = vand.u32 %v1852, 2147483648
    %v2252 = vor.u32 1.1754944e-38, %v2251
    %v2253 = vsel %vm2250, %v2252, %v2248
    %v2254 = vmul.f32 1.0, %v2253
    %v2255 = vrcp.pop %v1853
    %v2256 = vmul.f32 %v1853, %v2255
    %v2257 = vsub.f32 1.0, %v2256
    %v2258 = vmul.f32 %v2255, %v2257
    %v2259 = vadd.f32 %v2255, %v2258
    %vm2260 = vweird.f32 %v1853
    %vm2261 = vweird.f32 %v2255
    %vm2262 = vmor %vm2260, %vm2261
    %v2263 = vsel %vm2262, %v2255, %v2259
    %v2264 = vand.u32 2147483647, %v1853
    %vm2265 = vcmp.eq.f32.partialorder %v2264, 8.507059e+37
    %v2266 = vand.u32 %v1853, 2147483648
    %v2267 = vor.u32 1.1754944e-38, %v2266
    %v2268 = vsel %vm2265, %v2267, %v2263
    %v2269 = vmul.f32 1.0, %v2268
    %v2270 = vrcp.pop %v1854
    %v2271 = vmul.f32 %v1854, %v2270
    %v2272 = vsub.f32 1.0, %v2271
    %v2273 = vmul.f32 %v2270, %v2272
    %v2274 = vadd.f32 %v2270, %v2273
    %vm2275 = vweird.f32 %v1854
    %vm2276 = vweird.f32 %v2270
    %vm2277 = vmor %vm2275, %vm2276
    %v2278 = vsel %vm2277, %v2270, %v2274
    %v2279 = vand.u32 2147483647, %v1854
    %vm2280 = vcmp.eq.f32.partialorder %v2279, 8.507059e+37
    %v2281 = vand.u32 %v1854, 2147483648
    %v2282 = vor.u32 1.1754944e-38, %v2281
    %v2283 = vsel %vm2280, %v2282, %v2278
    %v2284 = vmul.f32 1.0, %v2283
    %v2285 = vrcp.pop %v1855
    %v2286 = vmul.f32 %v1855, %v2285
    %v2287 = vsub.f32 1.0, %v2286
    %v2288 = vmul.f32 %v2285, %v2287
    %v2289 = vadd.f32 %v2285, %v2288
    %vm2290 = vweird.f32 %v1855
    %vm2291 = vweird.f32 %v2285
    %vm2292 = vmor %vm2290, %vm2291
    %v2293 = vsel %vm2292, %v2285, %v2289
    %v2294 = vand.u32 2147483647, %v1855
    %vm2295 = vcmp.eq.f32.partialorder %v2294, 8.507059e+37
    %v2296 = vand.u32 %v1855, 2147483648
    %v2297 = vor.u32 1.1754944e-38, %v2296
    %v2298 = vsel %vm2295, %v2297, %v2293
    %v2299 = vmul.f32 1.0, %v2298
    %v2300 = vrcp.pop %v1856
    %v2301 = vmul.f32 %v1856, %v2300
    %v2302 = vsub.f32 1.0, %v2301
    %v2303 = vmul.f32 %v2300, %v2302
    %v2304 = vadd.f32 %v2300, %v2303
    %vm2305 = vweird.f32 %v1856
    %vm2306 = vweird.f32 %v2300
    %vm2307 = vmor %vm2305, %vm2306
    %v2308 = vsel %vm2307, %v2300, %v2304
    %v2309 = vand.u32 2147483647, %v1856
    %vm2310 = vcmp.eq.f32.partialorder %v2309, 8.507059e+37
    %v2311 = vand.u32 %v1856, 2147483648
    %v2312 = vor.u32 1.1754944e-38, %v2311
    %v2313 = vsel %vm2310, %v2312, %v2308
    %v2314 = vmul.f32 1.0, %v2313
    %v2315 = vrcp.pop %v1857
    %v2316 = vmul.f32 %v1857, %v2315
    %v2317 = vsub.f32 1.0, %v2316
    %v2318 = vmul.f32 %v2315, %v2317
    %v2319 = vadd.f32 %v2315, %v2318
    %vm2320 = vweird.f32 %v1857
    %vm2321 = vweird.f32 %v2315
    %vm2322 = vmor %vm2320, %vm2321
    %v2323 = vsel %vm2322, %v2315, %v2319
    %v2324 = vand.u32 2147483647, %v1857
    %vm2325 = vcmp.eq.f32.partialorder %v2324, 8.507059e+37
    %v2326 = vand.u32 %v1857, 2147483648
    %v2327 = vor.u32 1.1754944e-38, %v2326
    %v2328 = vsel %vm2325, %v2327, %v2323
    %v2329 = vmul.f32 1.0, %v2328
    %v2330 = vrcp.pop %v1858
    %v2331 = vmul.f32 %v1858, %v2330
    %v2332 = vsub.f32 1.0, %v2331
    %v2333 = vmul.f32 %v2330, %v2332
    %v2334 = vadd.f32 %v2330, %v2333
    %vm2335 = vweird.f32 %v1858
    %vm2336 = vweird.f32 %v2330
    %vm2337 = vmor %vm2335, %vm2336
    %v2338 = vsel %vm2337, %v2330, %v2334
    %v2339 = vand.u32 2147483647, %v1858
    %vm2340 = vcmp.eq.f32.partialorder %v2339, 8.507059e+37
    %v2341 = vand.u32 %v1858, 2147483648
    %v2342 = vor.u32 1.1754944e-38, %v2341
    %v2343 = vsel %vm2340, %v2342, %v2338
    %v2344 = vmul.f32 1.0, %v2343
    %v2345 = vrcp.pop %v1859
    %v2346 = vmul.f32 %v1859, %v2345
    %v2347 = vsub.f32 1.0, %v2346
    %v2348 = vmul.f32 %v2345, %v2347
    %v2349 = vadd.f32 %v2345, %v2348
    %vm2350 = vweird.f32 %v1859
    %vm2351 = vweird.f32 %v2345
    %vm2352 = vmor %vm2350, %vm2351
    %v2353 = vsel %vm2352, %v2345, %v2349
    %v2354 = vand.u32 2147483647, %v1859
    %vm2355 = vcmp.eq.f32.partialorder %v2354, 8.507059e+37
    %v2356 = vand.u32 %v1859, 2147483648
    %v2357 = vor.u32 1.1754944e-38, %v2356
    %v2358 = vsel %vm2355, %v2357, %v2353
    %v2359 = vmul.f32 1.0, %v2358
    %v2360 = vrcp.pop %v1860
    %v2361 = vmul.f32 %v1860, %v2360
    %v2362 = vsub.f32 1.0, %v2361
    %v2363 = vmul.f32 %v2360, %v2362
    %v2364 = vadd.f32 %v2360, %v2363
    %vm2365 = vweird.f32 %v1860
    %vm2366 = vweird.f32 %v2360
    %vm2367 = vmor %vm2365, %vm2366
    %v2368 = vsel %vm2367, %v2360, %v2364
    %v2369 = vand.u32 2147483647, %v1860
    %vm2370 = vcmp.eq.f32.partialorder %v2369, 8.507059e+37
    %v2371 = vand.u32 %v1860, 2147483648
    %v2372 = vor.u32 1.1754944e-38, %v2371
    %v2373 = vsel %vm2370, %v2372, %v2368
    %v2374 = vmul.f32 1.0, %v2373
    %v2375 = vrcp.pop %v1861
    %v2376 = vmul.f32 %v1861, %v2375
    %v2377 = vsub.f32 1.0, %v2376
    %v2378 = vmul.f32 %v2375, %v2377
    %v2379 = vadd.f32 %v2375, %v2378
    %vm2380 = vweird.f32 %v1861
    %vm2381 = vweird.f32 %v2375
    %vm2382 = vmor %vm2380, %vm2381
    %v2383 = vsel %vm2382, %v2375, %v2379
    %v2384 = vand.u32 2147483647, %v1861
    %vm2385 = vcmp.eq.f32.partialorder %v2384, 8.507059e+37
    %v2386 = vand.u32 %v1861, 2147483648
    %v2387 = vor.u32 1.1754944e-38, %v2386
    %v2388 = vsel %vm2385, %v2387, %v2383
    %v2389 = vmul.f32 1.0, %v2388
    %v2390 = vrcp.pop %v1862
    %v2391 = vmul.f32 %v1862, %v2390
    %v2392 = vsub.f32 1.0, %v2391
    %v2393 = vmul.f32 %v2390, %v2392
    %v2394 = vadd.f32 %v2390, %v2393
    %vm2395 = vweird.f32 %v1862
    %vm2396 = vweird.f32 %v2390
    %vm2397 = vmor %vm2395, %vm2396
    %v2398 = vsel %vm2397, %v2390, %v2394
    %v2399 = vand.u32 2147483647, %v1862
    %vm2400 = vcmp.eq.f32.partialorder %v2399, 8.507059e+37
    %v2401 = vand.u32 %v1862, 2147483648
    %v2402 = vor.u32 1.1754944e-38, %v2401
    %v2403 = vsel %vm2400, %v2402, %v2398
    %v2404 = vmul.f32 1.0, %v2403
    %v2405 = vrcp.pop %v1863
    %v2406 = vmul.f32 %v1863, %v2405
    %v2407 = vsub.f32 1.0, %v2406
    %v2408 = vmul.f32 %v2405, %v2407
    %v2409 = vadd.f32 %v2405, %v2408
    %vm2410 = vweird.f32 %v1863
    %vm2411 = vweird.f32 %v2405
    %vm2412 = vmor %vm2410, %vm2411
    %v2413 = vsel %vm2412, %v2405, %v2409
    %v2414 = vand.u32 2147483647, %v1863
    %vm2415 = vcmp.eq.f32.partialorder %v2414, 8.507059e+37
    %v2416 = vand.u32 %v1863, 2147483648
    %v2417 = vor.u32 1.1754944e-38, %v2416
    %v2418 = vsel %vm2415, %v2417, %v2413
    %v2419 = vmul.f32 1.0, %v2418
    %v2420 = vrcp.pop %v1864
    %v2421 = vmul.f32 %v1864, %v2420
    %v2422 = vsub.f32 1.0, %v2421
    %v2423 = vmul.f32 %v2420, %v2422
    %v2424 = vadd.f32 %v2420, %v2423
    %vm2425 = vweird.f32 %v1864
    %vm2426 = vweird.f32 %v2420
    %vm2427 = vmor %vm2425, %vm2426
    %v2428 = vsel %vm2427, %v2420, %v2424
    %v2429 = vand.u32 2147483647, %v1864
    %vm2430 = vcmp.eq.f32.partialorder %v2429, 8.507059e+37
    %v2431 = vand.u32 %v1864, 2147483648
    %v2432 = vor.u32 1.1754944e-38, %v2431
    %v2433 = vsel %vm2430, %v2432, %v2428
    %v2434 = vmul.f32 1.0, %v2433
    %2436 = vset.pattern.permute.xlu0 0
    %2437 = vperm.xlu0 %2436, %v1879
    %v2438 = vpop.permute.xlu0 %2437
    %2441 = vset.pattern.permute.xlu0 0
    %2442 = vperm.xlu0 %2441, %v1894
    %v2443 = vpop.permute.xlu0 %2442
    %2446 = vset.pattern.permute.xlu0 0
    %2447 = vperm.xlu0 %2446, %v1909
    %v2448 = vpop.permute.xlu0 %2447
    %2451 = vset.pattern.permute.xlu0 0
    %2452 = vperm.xlu0 %2451, %v1924
    %v2453 = vpop.permute.xlu0 %2452
    %2456 = vset.pattern.permute.xlu0 0
    %2457 = vperm.xlu0 %2456, %v1939
    %v2458 = vpop.permute.xlu0 %2457
    %2461 = vset.pattern.permute.xlu0 0
    %2462 = vperm.xlu0 %2461, %v1954
    %v2463 = vpop.permute.xlu0 %2462
    %2466 = vset.pattern.permute.xlu0 0
    %2467 = vperm.xlu0 %2466, %v1969
    %v2468 = vpop.permute.xlu0 %2467
    %2471 = vset.pattern.permute.xlu0 0
    %2472 = vperm.xlu0 %2471, %v1984
    %v2473 = vpop.permute.xlu0 %2472
    %2476 = vset.pattern.permute.xlu0 0
    %2477 = vperm.xlu0 %2476, %v1999
    %v2478 = vpop.permute.xlu0 %2477
    %2481 = vset.pattern.permute.xlu0 0
    %2482 = vperm.xlu0 %2481, %v2014
    %v2483 = vpop.permute.xlu0 %2482
    %2486 = vset.pattern.permute.xlu0 0
    %2487 = vperm.xlu0 %2486, %v2029
    %v2488 = vpop.permute.xlu0 %2487
    %2491 = vset.pattern.permute.xlu0 0
    %2492 = vperm.xlu0 %2491, %v2044
    %v2493 = vpop.permute.xlu0 %2492
    %2496 = vset.pattern.permute.xlu0 0
    %2497 = vperm.xlu0 %2496, %v2059
    %v2498 = vpop.permute.xlu0 %2497
    %2501 = vset.pattern.permute.xlu0 0
    %2502 = vperm.xlu0 %2501, %v2074
    %v2503 = vpop.permute.xlu0 %2502
    %2506 = vset.pattern.permute.xlu0 0
    %2507 = vperm.xlu0 %2506, %v2089
    %v2508 = vpop.permute.xlu0 %2507
    %2511 = vset.pattern.permute.xlu0 0
    %2512 = vperm.xlu0 %2511, %v2104
    %v2513 = vpop.permute.xlu0 %2512
    %2516 = vset.pattern.permute.xlu0 0
    %2517 = vperm.xlu0 %2516, %v2119
    %v2518 = vpop.permute.xlu0 %2517
    %2521 = vset.pattern.permute.xlu0 0
    %2522 = vperm.xlu0 %2521, %v2134
    %v2523 = vpop.permute.xlu0 %2522
    %2526 = vset.pattern.permute.xlu0 0
    %2527 = vperm.xlu0 %2526, %v2149
    %v2528 = vpop.permute.xlu0 %2527
    %2531 = vset.pattern.permute.xlu0 0
    %2532 = vperm.xlu0 %2531, %v2164
    %v2533 = vpop.permute.xlu0 %2532
    %2536 = vset.pattern.permute.xlu0 0
    %2537 = vperm.xlu0 %2536, %v2179
    %v2538 = vpop.permute.xlu0 %2537
    %2541 = vset.pattern.permute.xlu0 0
    %2542 = vperm.xlu0 %2541, %v2194
    %v2543 = vpop.permute.xlu0 %2542
    %2546 = vset.pattern.permute.xlu0 0
    %2547 = vperm.xlu0 %2546, %v2209
    %v2548 = vpop.permute.xlu0 %2547
    %2551 = vset.pattern.permute.xlu0 0
    %2552 = vperm.xlu0 %2551, %v2224
    %v2553 = vpop.permute.xlu0 %2552
    %2556 = vset.pattern.permute.xlu0 0
    %2557 = vperm.xlu0 %2556, %v2239
    %v2558 = vpop.permute.xlu0 %2557
    %2561 = vset.pattern.permute.xlu0 0
    %2562 = vperm.xlu0 %2561, %v2254
    %v2563 = vpop.permute.xlu0 %2562
    %2566 = vset.pattern.permute.xlu0 0
    %2567 = vperm.xlu0 %2566, %v2269
    %v2568 = vpop.permute.xlu0 %2567
    %2571 = vset.pattern.permute.xlu0 0
    %2572 = vperm.xlu0 %2571, %v2284
    %v2573 = vpop.permute.xlu0 %2572
    %2576 = vset.pattern.permute.xlu0 0
    %2577 = vperm.xlu0 %2576, %v2299
    %v2578 = vpop.permute.xlu0 %2577
    %2581 = vset.pattern.permute.xlu0 0
    %2582 = vperm.xlu0 %2581, %v2314
    %v2583 = vpop.permute.xlu0 %2582
    %2586 = vset.pattern.permute.xlu0 0
    %2587 = vperm.xlu0 %2586, %v2329
    %v2588 = vpop.permute.xlu0 %2587
    %2591 = vset.pattern.permute.xlu0 0
    %2592 = vperm.xlu0 %2591, %v2344
    %v2593 = vpop.permute.xlu0 %2592
    %2596 = vset.pattern.permute.xlu0 0
    %2597 = vperm.xlu0 %2596, %v2359
    %v2598 = vpop.permute.xlu0 %2597
    %2601 = vset.pattern.permute.xlu0 0
    %2602 = vperm.xlu0 %2601, %v2374
    %v2603 = vpop.permute.xlu0 %2602
    %2606 = vset.pattern.permute.xlu0 0
    %2607 = vperm.xlu0 %2606, %v2389
    %v2608 = vpop.permute.xlu0 %2607
    %2611 = vset.pattern.permute.xlu0 0
    %2612 = vperm.xlu0 %2611, %v2404
    %v2613 = vpop.permute.xlu0 %2612
    %2616 = vset.pattern.permute.xlu0 0
    %2617 = vperm.xlu0 %2616, %v2419
    %v2618 = vpop.permute.xlu0 %2617
    %2621 = vset.pattern.permute.xlu0 0
    %2622 = vperm.xlu0 %2621, %v2434
    %v2623 = vpop.permute.xlu0 %2622
    %vm2625 = vcmask 523264
    %v2626 = vsel %vm2625, %v828, %v2438
    %v2627 = vsel %vm2625, %v843, %v2443
    %v2628 = vsel %vm2625, %v858, %v2448
    %v2629 = vsel %vm2625, %v873, %v2453
    %v2630 = vsel %vm2625, %v888, %v2458
    %v2631 = vsel %vm2625, %v903, %v2463
    %v2632 = vsel %vm2625, %v918, %v2468
    %v2633 = vsel %vm2625, %v933, %v2473
    %v2634 = vsel %vm2625, %v948, %v2478
    %v2635 = vsel %vm2625, %v963, %v2483
    %v2636 = vsel %vm2625, %v978, %v2488
    %v2637 = vsel %vm2625, %v993, %v2493
    %v2638 = vsel %vm2625, %v1008, %v2498
    %v2639 = vsel %vm2625, %v1023, %v2503
    %v2640 = vsel %vm2625, %v1038, %v2508
    %v2641 = vsel %vm2625, %v1053, %v2513
    %v2642 = vsel %vm2625, %v1068, %v2518
    %v2643 = vsel %vm2625, %v1083, %v2523
    %v2644 = vsel %vm2625, %v1098, %v2528
    %v2645 = vsel %vm2625, %v1113, %v2533
    %v2646 = vsel %vm2625, %v1128, %v2538
    %v2647 = vsel %vm2625, %v1143, %v2543
    %v2648 = vsel %vm2625, %v1158, %v2548
    %v2649 = vsel %vm2625, %v1173, %v2553
    %v2650 = vsel %vm2625, %v1188, %v2558
    %v2651 = vsel %vm2625, %v1203, %v2563
    %v2652 = vsel %vm2625, %v1218, %v2568
    %v2653 = vsel %vm2625, %v1233, %v2573
    %v2654 = vsel %vm2625, %v1248, %v2578
    %v2655 = vsel %vm2625, %v1263, %v2583
    %v2656 = vsel %vm2625, %v1278, %v2588
    %v2657 = vsel %vm2625, %v1293, %v2593
    %v2658 = vsel %vm2625, %v1308, %v2598
    %v2659 = vsel %vm2625, %v1323, %v2603
    %v2660 = vsel %vm2625, %v1338, %v2608
    %v2661 = vsel %vm2625, %v1353, %v2613
    %v2662 = vsel %vm2625, %v1368, %v2618
    %v2663 = vsel %vm2625, %v1383, %v2623
    %v2664 = vpack.c.bf16 %v2626, %v2626
    %v2665 = vpack.c.bf16 %v2627, %v2627
    %v2666 = vpack.c.bf16 %v2628, %v2628
    %v2667 = vpack.c.bf16 %v2629, %v2629
    %v2668 = vpack.c.bf16 %v2630, %v2630
    %v2669 = vpack.c.bf16 %v2631, %v2631
    %v2670 = vpack.c.bf16 %v2632, %v2632
    %v2671 = vpack.c.bf16 %v2633, %v2633
    %v2672 = vpack.c.bf16 %v2634, %v2634
    %v2673 = vpack.c.bf16 %v2635, %v2635
    %v2674 = vpack.c.bf16 %v2636, %v2636
    %v2675 = vpack.c.bf16 %v2637, %v2637
    %v2676 = vpack.c.bf16 %v2638, %v2638
    %v2677 = vpack.c.bf16 %v2639, %v2639
    %v2678 = vpack.c.bf16 %v2640, %v2640
    %v2679 = vpack.c.bf16 %v2641, %v2641
    %v2680 = vpack.c.bf16 %v2642, %v2642
    %v2681 = vpack.c.bf16 %v2643, %v2643
    %v2682 = vpack.c.bf16 %v2644, %v2644
    %v2683 = vpack.c.bf16 %v2645, %v2645
    %v2684 = vpack.c.bf16 %v2646, %v2646
    %v2685 = vpack.c.bf16 %v2647, %v2647
    %v2686 = vpack.c.bf16 %v2648, %v2648
    %v2687 = vpack.c.bf16 %v2649, %v2649
    %v2688 = vpack.c.bf16 %v2650, %v2650
    %v2689 = vpack.c.bf16 %v2651, %v2651
    %v2690 = vpack.c.bf16 %v2652, %v2652
    %v2691 = vpack.c.bf16 %v2653, %v2653
    %v2692 = vpack.c.bf16 %v2654, %v2654
    %v2693 = vpack.c.bf16 %v2655, %v2655
    %v2694 = vpack.c.bf16 %v2656, %v2656
    %v2695 = vpack.c.bf16 %v2657, %v2657
    %v2696 = vpack.c.bf16 %v2658, %v2658
    %v2697 = vpack.c.bf16 %v2659, %v2659
    %v2698 = vpack.c.bf16 %v2660, %v2660
    %v2699 = vpack.c.bf16 %v2661, %v2661
    %v2700 = vpack.c.bf16 %v2662, %v2662
    %v2701 = vpack.c.bf16 %v2663, %v2663
    %2702 = vst [vmem:[#allocation3] sm:$0xf] %v2664
    %2703 = vst [vmem:[#allocation3 + $0x4] sm:$0xf] %v2665
    %2704 = vst [vmem:[#allocation3 + $0x8] sm:$0xf] %v2666
    %2705 = vst [vmem:[#allocation3 + $0xc] sm:$0xf] %v2667
    %2706 = vst [vmem:[#allocation3 + $0x10] sm:$0xf] %v2668
    %2707 = vst [vmem:[#allocation3 + $0x14] sm:$0xf] %v2669
    %2708 = vst [vmem:[#allocation3 + $0x18] sm:$0xf] %v2670
    %2709 = vst [vmem:[#allocation3 + $0x1c] sm:$0xf] %v2671
    %2710 = vst [vmem:[#allocation3 + $0x20] sm:$0xf] %v2672
    %2711 = vst [vmem:[#allocation3 + $0x24] sm:$0xf] %v2673
    %2712 = vst [vmem:[#allocation3 + $0x28] sm:$0xf] %v2674
    %2713 = vst [vmem:[#allocation3 + $0x2c] sm:$0xf] %v2675
    %2714 = vst [vmem:[#allocation3 + $0x30] sm:$0xf] %v2676
    %2715 = vst [vmem:[#allocation3 + $0x34] sm:$0xf] %v2677
    %2716 = vst [vmem:[#allocation3 + $0x38] sm:$0xf] %v2678
    %2717 = vst [vmem:[#allocation3 + $0x3c] sm:$0xf] %v2679
    %2718 = vst [vmem:[#allocation3 + $0x40] sm:$0xf] %v2680
    %2719 = vst [vmem:[#allocation3 + $0x44] sm:$0xf] %v2681
    %2720 = vst [vmem:[#allocation3 + $0x48] sm:$0xf] %v2682
    %2721 = vst [vmem:[#allocation3 + $0x4c] sm:$0xf] %v2683
    %2722 = vst [vmem:[#allocation3 + $0x50] sm:$0xf] %v2684
    %2723 = vst [vmem:[#allocation3 + $0x54] sm:$0xf] %v2685
    %2724 = vst [vmem:[#allocation3 + $0x58] sm:$0xf] %v2686
    %2725 = vst [vmem:[#allocation3 + $0x5c] sm:$0xf] %v2687
    %2726 = vst [vmem:[#allocation3 + $0x60] sm:$0xf] %v2688
    %2727 = vst [vmem:[#allocation3 + $0x64] sm:$0xf] %v2689
    %2728 = vst [vmem:[#allocation3 + $0x68] sm:$0xf] %v2690
    %2729 = vst [vmem:[#allocation3 + $0x6c] sm:$0xf] %v2691
    %2730 = vst [vmem:[#allocation3 + $0x70] sm:$0xf] %v2692
    %2731 = vst [vmem:[#allocation3 + $0x74] sm:$0xf] %v2693
    %2732 = vst [vmem:[#allocation3 + $0x78] sm:$0xf] %v2694
    %2733 = vst [vmem:[#allocation3 + $0x7c] sm:$0xf] %v2695
    %2734 = vst [vmem:[#allocation3 + $0x80] sm:$0xf] %v2696
    %2735 = vst [vmem:[#allocation3 + $0x84] sm:$0xf] %v2697
    %2736 = vst [vmem:[#allocation3 + $0x88] sm:$0xf] %v2698
    %2737 = vst [vmem:[#allocation3 + $0x8c] sm:$0xf] %v2699
    %2738 = vst [vmem:[#allocation3 + $0x90] sm:$0xf] %v2700
    %2739 = vst [vmem:[#allocation3 + $0x94] sm:$0xf] %v2701
    // Predicated region
    $region38: #{tpu_custom_call.1} parent=1 // pred_check
      _
    $region39: #{tpu_custom_call.1} parent=1 // pred_check_branch
      %2741 = sbr.rel (0) target = $region41
    $region40: #{tpu_custom_call.1} parent=1 // pred_region
      %2743 = vsyncadd [#allocation4], 0
      %s2744 = sshll.u32 [#allocation3], 4
      %s2745 = int_to_ptr.vmem [resolvable:$true] %s2744
      %s2746 = sshll.u32 %s9, 4
      %s2747 = int_to_ptr.hbm [resolvable:$true] %s2746
      %2752 = dma.vmem_to_hbm [thread:$0]  %s2745, 2432, %s2747, [#allocation4], 64, 64, 4
    $region41: #{tpu_custom_call.1} parent=1 // pred_fallthru
      _
    // Predicated region
    $region42: #{tpu_custom_call.1} parent=1 // pred_check
      _
    $region43: #{tpu_custom_call.1} parent=1 // pred_check_branch
      %2754 = sbr.rel (0) target = $region45
    $region44: #{tpu_custom_call.1} parent=1 // pred_region
      %2756 = dma.done [#allocation4], 2432
    $region45: #{tpu_custom_call.1} parent=1 // pred_fallthru
      _
    %2757 = vsyncpa [#allocation4], 1

</llo_original>
